<compile_context>
chip_gen: v7x
topology: tpu7x:2x2x1
jax: 0.10.0
libtpu: 0.0.40
codegen_flags: <defaults>
</compile_context>

<pallas_src>
import jax
import jax.numpy as jnp
from jax.experimental import pallas as pl
from jax.experimental.pallas import tpu as pltpu


def ncf_kernel(uidx_ref, iidx_ref,          # [tb, 1] int32 index blocks (VMEM)
               ut3_ref, it3_ref,            # [3*Nu, K] / [3*Ni, K] bf16 split tables
               w1u_ref, w1i_ref,            # [K, K] bf16 each (pre-split W1)
               b1_ref, w2_ref,              # [1, K] f32 each
               out_ref, ue_ref, ie_ref):    # (1, tb) f32, (tb, K) f32, (tb, K) f32
    tb = ue_ref.shape[0]
    nu = ut3_ref.shape[0] // 3
    ni = it3_ref.shape[0] // 3

    u = uidx_ref[...]                        # [tb, 1] int32
    i = iidx_ref[...]                        # [tb, 1] int32

    # Vectorized embedding gather: one-hot replicated over the three bf16 split
    # planes of the f32 table -> one MXU matmul reconstructs ~exact f32 rows.
    iu = jax.lax.broadcasted_iota(jnp.int32, (tb, 3 * nu), 1)
    match_u = (iu == u) | (iu == u + nu) | (iu == u + 2 * nu)
    oh_u = jnp.where(match_u, 1.0, 0.0).astype(jnp.bfloat16)          # [tb, 3*Nu]
    ue = jnp.dot(oh_u, ut3_ref[...], preferred_element_type=jnp.float32)   # [tb, K]

    ii = jax.lax.broadcasted_iota(jnp.int32, (tb, 3 * ni), 1)
    match_i = (ii == i) | (ii == i + ni) | (ii == i + 2 * ni)
    oh_i = jnp.where(match_i, 1.0, 0.0).astype(jnp.bfloat16)          # [tb, 3*Ni]
    ie = jnp.dot(oh_i, it3_ref[...], preferred_element_type=jnp.float32)   # [tb, K]

    # Write gathered rows straight into the output blocks (no scratch copies).
    ue_ref[...] = ue
    ie_ref[...] = ie

    # h1 = relu([ue, ie] @ W1 + b1) without the concat: two bf16 MXU matmuls
    # accumulated in f32.
    h1 = jnp.dot(ue.astype(jnp.bfloat16), w1u_ref[...],
                 preferred_element_type=jnp.float32)
    h1 = h1 + jnp.dot(ie.astype(jnp.bfloat16), w1i_ref[...],
                      preferred_element_type=jnp.float32)
    h1 = jnp.maximum(h1 + b1_ref[...], 0.0)                           # [tb, K] f32

    # Final K -> 1 projection: VPU multiply + lane reduce, emitted lane-dense.
    s = jnp.sum(h1 * w2_ref[...], axis=-1)                            # [tb]
    out_ref[...] = s[None, :]                                         # (1, tb)


def _split3_bf16(t):
    """Split an f32 table into 3 stacked bf16 planes so hi+mid+lo ~= t exactly."""
    p0 = t.astype(jnp.bfloat16)
    r1 = t - p0.astype(jnp.float32)
    p1 = r1.astype(jnp.bfloat16)
    r2 = r1 - p1.astype(jnp.float32)
    p2 = r2.astype(jnp.bfloat16)
    return jnp.concatenate([p0, p1, p2], axis=0)      # [3N, K] bf16


def ncf_forward(x, user_table, item_table, w1, b1, w2, *, tb=256):
    """x: [B,2] int (user, item). Returns (out [B,1], user_embed [B,K], item_embed [B,K])."""
    B = x.shape[0]
    Nu, K = user_table.shape
    Ni = item_table.shape[0]

    # Batch tiling: single tile if it fits, otherwise 128-multiple tiles with an
    # even tile count so v7x's two TensorCores split the parallel axis evenly.
    Bp0 = ((B + 7) // 8) * 8
    if Bp0 <= tb:
        tb_eff, nb = Bp0, 1
    else:
        tb_eff = max(128, (tb // 128) * 128)
        nb = pl.cdiv(B, tb_eff)
        if nb % 2:
            nb += 1
    Bp = nb * tb_eff

    # Indices. Note: nn.Embedding would raise on out-of-range indices; here they
    # are clamped to valid rows instead (wrong-but-plausible rather than error).
    user_idx = jnp.clip(x[:, 0].astype(jnp.int32), 0, Nu - 1)
    item_idx = jnp.clip(x[:, 1].astype(jnp.int32), 0, Ni - 1)
    if Bp != B:
        user_idx = jnp.pad(user_idx, (0, Bp - B))
        item_idx = jnp.pad(item_idx, (0, Bp - B))
    user_idx = user_idx.reshape(Bp, 1)
    item_idx = item_idx.reshape(Bp, 1)

    # Weights: bf16 split tables, pre-split bf16 W1 halves, f32 bias / w2 rows.
    ut3 = _split3_bf16(user_table)
    it3 = _split3_bf16(item_table)
    w1u = w1[:K].astype(jnp.bfloat16)
    w1i = w1[K:].astype(jnp.bfloat16)
    b1_row = b1.reshape(1, K).astype(jnp.float32)
    w2_row = w2.reshape(1, K).astype(jnp.float32)

    out_row, ue, ie = pl.pallas_call(
        ncf_kernel,
        grid=(nb,),
        in_specs=[
            pl.BlockSpec((tb_eff, 1), lambda i: (i, 0)),      # user indices
            pl.BlockSpec((tb_eff, 1), lambda i: (i, 0)),      # item indices
            pl.BlockSpec((3 * Nu, K), lambda i: (0, 0)),      # user table (3 planes)
            pl.BlockSpec((3 * Ni, K), lambda i: (0, 0)),      # item table (3 planes)
            pl.BlockSpec((K, K), lambda i: (0, 0)),           # W1_u
            pl.BlockSpec((K, K), lambda i: (0, 0)),           # W1_i
            pl.BlockSpec((1, K), lambda i: (0, 0)),           # b1
            pl.BlockSpec((1, K), lambda i: (0, 0)),           # w2 row
        ],
        out_specs=(
            pl.BlockSpec((1, tb_eff), lambda i: (0, i)),      # lane-dense scores
            pl.BlockSpec((tb_eff, K), lambda i: (i, 0)),      # user embeddings
            pl.BlockSpec((tb_eff, K), lambda i: (i, 0)),      # item embeddings
        ),
        out_shape=(
            jax.ShapeDtypeStruct((1, Bp), jnp.float32),
            jax.ShapeDtypeStruct((Bp, K), jnp.float32),
            jax.ShapeDtypeStruct((Bp, K), jnp.float32),
        ),
        compiler_params=pltpu.CompilerParams(
            dimension_semantics=("parallel",),
            vmem_limit_bytes=32 * 1024 * 1024,
        ),
    )(user_idx, item_idx, ut3, it3, w1u, w1i, b1_row, w2_row)

    out = out_row.reshape(Bp, 1)[:B]
    return out, ue[:B], ie[:B]


def init_params(key, num_users, num_items, embedding_k):
    ks = jax.random.split(key, 5)
    # nn.Embedding default init: N(0, 1)
    user_table = jax.random.normal(ks[0], (num_users, embedding_k), jnp.float32)
    item_table = jax.random.normal(ks[1], (num_items, embedding_k), jnp.float32)
    # nn.Linear default init: U(-1/sqrt(fan_in), 1/sqrt(fan_in)); stored pre-transposed.
    fan1 = 2 * embedding_k
    bound1 = 1.0 / jnp.sqrt(fan1)
    w1 = jax.random.uniform(ks[2], (fan1, embedding_k), jnp.float32, -bound1, bound1)
    b1 = jax.random.uniform(ks[3], (embedding_k,), jnp.float32, -bound1, bound1)
    bound2 = 1.0 / jnp.sqrt(embedding_k)
    w2 = jax.random.uniform(ks[4], (embedding_k,), jnp.float32, -bound2, bound2)
    return user_table, item_table, w1, b1, w2


if __name__ == "__main__":
    num_users, num_items, embedding_k = 96, 160, 32
    batch, tile_b = 200, 128     # batch not a tile multiple -> exercises padding + 2-step grid

    key = jax.random.PRNGKey(0)
    pkey, ukey, ikey = jax.random.split(key, 3)
    user_table, item_table, w1, b1, w2 = init_params(
        pkey, num_users, num_items, embedding_k)

    user_ids = jax.random.randint(ukey, (batch,), 0, num_users, jnp.int32)
    item_ids = jax.random.randint(ikey, (batch,), 0, num_items, jnp.int32)
    x = jnp.stack([user_ids, item_ids], axis=1)                 # [B, 2] int32

    out, user_embed, item_embed = ncf_forward(
        x, user_table, item_table, w1, b1, w2, tb=tile_b)
    jax.block_until_ready((out, user_embed, item_embed))

    # Reference with the same mixed precision (bf16 matmul operands, f32 accum).
    K = embedding_k
    u_ref = user_table[user_ids]
    i_ref = item_table[item_ids]
    h1_ref = jnp.maximum(
        jnp.dot(u_ref.astype(jnp.bfloat16), w1[:K].astype(jnp.bfloat16),
                preferred_element_type=jnp.float32)
        + jnp.dot(i_ref.astype(jnp.bfloat16), w1[K:].astype(jnp.bfloat16),
                  preferred_element_type=jnp.float32)
        + b1[None, :], 0.0)
    out_expect = jnp.sum(h1_ref * w2[None, :], axis=-1, keepdims=True)

    assert out.shape == (batch, 1)
    assert jnp.allclose(user_embed, u_ref, atol=1e-5), "user embed mismatch"
    assert jnp.allclose(item_embed, i_ref, atol=1e-5), "item embed mismatch"
    assert jnp.allclose(out, out_expect, atol=2e-3, rtol=2e-3), "output mismatch"

    print("KERNEL_OK")
</pallas_src>

<mosaic_0001>
module attributes {stable_mosaic.version = 11 : i64} {
  func.func @ncf_kernel(%arg0: i32, %arg1: memref<128x1xi32, #tpu.memory_space<vmem>>, %arg2: memref<128x1xi32, #tpu.memory_space<vmem>>, %arg3: memref<288x32xbf16, #tpu.memory_space<vmem>>, %arg4: memref<480x32xbf16, #tpu.memory_space<vmem>>, %arg5: memref<32x32xbf16, #tpu.memory_space<vmem>>, %arg6: memref<32x32xbf16, #tpu.memory_space<vmem>>, %arg7: memref<1x32xf32, #tpu.memory_space<vmem>>, %arg8: memref<1x32xf32, #tpu.memory_space<vmem>>, %arg9: memref<1x128xf32, #tpu.memory_space<vmem>>, %arg10: memref<128x32xf32, #tpu.memory_space<vmem>>, %arg11: memref<128x32xf32, #tpu.memory_space<vmem>>) attributes {dimension_semantics = [#tpu.dimension_semantics<parallel>], iteration_bounds = array<i64: 2>, scalar_prefetch = 0 : i64, scratch_operands = 0 : i64, tpu.core_type = #tpu.core_type<tc>, window_params = [{transform_indices = @transform_0, window_bounds = array<i64: 128, 1>}, {transform_indices = @transform_1, window_bounds = array<i64: 128, 1>}, {pipeline_mode = #tpu.pipeline_mode<synchronous>, transform_indices = @transform_2, window_bounds = array<i64: 288, 32>}, {pipeline_mode = #tpu.pipeline_mode<synchronous>, transform_indices = @transform_3, window_bounds = array<i64: 480, 32>}, {pipeline_mode = #tpu.pipeline_mode<synchronous>, transform_indices = @transform_4, window_bounds = array<i64: 32, 32>}, {pipeline_mode = #tpu.pipeline_mode<synchronous>, transform_indices = @transform_5, window_bounds = array<i64: 32, 32>}, {pipeline_mode = #tpu.pipeline_mode<synchronous>, transform_indices = @transform_6, window_bounds = array<i64: 1, 32>}, {pipeline_mode = #tpu.pipeline_mode<synchronous>, transform_indices = @transform_7, window_bounds = array<i64: 1, 32>}, {transform_indices = @transform_8, window_bounds = array<i64: 1, 128>}, {transform_indices = @transform_9, window_bounds = array<i64: 128, 32>}, {transform_indices = @transform_10, window_bounds = array<i64: 128, 32>}]} {
    %c0 = arith.constant 0 : index
    %c0_0 = arith.constant 0 : index
    %0 = vector.load %arg1[%c0, %c0_0] : memref<128x1xi32, #tpu.memory_space<vmem>>, vector<128x1xi32>
    %c0_1 = arith.constant 0 : index
    %c0_2 = arith.constant 0 : index
    %1 = vector.load %arg2[%c0_1, %c0_2] : memref<128x1xi32, #tpu.memory_space<vmem>>, vector<128x1xi32>
    %2 = tpu.iota {dimensions = array<i32: 1>} : vector<128x288xi32>
    %3 = vector.broadcast %0 : vector<128x1xi32> to vector<128x288xi32>
    %4 = arith.cmpi eq, %2, %3 : vector<128x288xi32>
    %c96_i32 = arith.constant 96 : i32
    %5 = vector.broadcast %c96_i32 : i32 to vector<128x1xi32>
    %6 = arith.addi %0, %5 : vector<128x1xi32>
    %7 = vector.broadcast %6 : vector<128x1xi32> to vector<128x288xi32>
    %8 = arith.cmpi eq, %2, %7 : vector<128x288xi32>
    %9 = arith.ori %4, %8 : vector<128x288xi1>
    %c192_i32 = arith.constant 192 : i32
    %10 = vector.broadcast %c192_i32 : i32 to vector<128x1xi32>
    %11 = arith.addi %0, %10 : vector<128x1xi32>
    %12 = vector.broadcast %11 : vector<128x1xi32> to vector<128x288xi32>
    %13 = arith.cmpi eq, %2, %12 : vector<128x288xi32>
    %14 = arith.ori %9, %13 : vector<128x288xi1>
    %cst = arith.constant 1.000000e+00 : f32
    %cst_3 = arith.constant 0.000000e+00 : f32
    %15 = vector.broadcast %cst : f32 to vector<128x288xf32>
    %16 = vector.broadcast %cst_3 : f32 to vector<128x288xf32>
    %17 = arith.select %14, %15, %16 : vector<128x288xi1>, vector<128x288xf32>
    %18 = arith.truncf %17 : vector<128x288xf32> to vector<128x288xbf16>
    %c0_4 = arith.constant 0 : index
    %c0_5 = arith.constant 0 : index
    %19 = vector.load %arg3[%c0_4, %c0_5] : memref<288x32xbf16, #tpu.memory_space<vmem>>, vector<288x32xbf16>
    %cst_6 = arith.constant dense<0.000000e+00> : vector<128x32xf32>
    %20 = tpu.matmul %18, %19, %cst_6 {dimension_numbers = #tpu.dot_dimension_numbers<[1], [0], [0], [1], [0, 0, 1, 1], [], []>} : vector<128x288xbf16>, vector<288x32xbf16>, vector<128x32xf32> -> vector<128x32xf32>
    %21 = tpu.iota {dimensions = array<i32: 1>} : vector<128x480xi32>
    %22 = vector.broadcast %1 : vector<128x1xi32> to vector<128x480xi32>
    %23 = arith.cmpi eq, %21, %22 : vector<128x480xi32>
    %c160_i32 = arith.constant 160 : i32
    %24 = vector.broadcast %c160_i32 : i32 to vector<128x1xi32>
    %25 = arith.addi %1, %24 : vector<128x1xi32>
    %26 = vector.broadcast %25 : vector<128x1xi32> to vector<128x480xi32>
    %27 = arith.cmpi eq, %21, %26 : vector<128x480xi32>
    %28 = arith.ori %23, %27 : vector<128x480xi1>
    %c320_i32 = arith.constant 320 : i32
    %29 = vector.broadcast %c320_i32 : i32 to vector<128x1xi32>
    %30 = arith.addi %1, %29 : vector<128x1xi32>
    %31 = vector.broadcast %30 : vector<128x1xi32> to vector<128x480xi32>
    %32 = arith.cmpi eq, %21, %31 : vector<128x480xi32>
    %33 = arith.ori %28, %32 : vector<128x480xi1>
    %cst_7 = arith.constant 1.000000e+00 : f32
    %cst_8 = arith.constant 0.000000e+00 : f32
    %34 = vector.broadcast %cst_7 : f32 to vector<128x480xf32>
    %35 = vector.broadcast %cst_8 : f32 to vector<128x480xf32>
    %36 = arith.select %33, %34, %35 : vector<128x480xi1>, vector<128x480xf32>
    %37 = arith.truncf %36 : vector<128x480xf32> to vector<128x480xbf16>
    %c0_9 = arith.constant 0 : index
    %c0_10 = arith.constant 0 : index
    %38 = vector.load %arg4[%c0_9, %c0_10] : memref<480x32xbf16, #tpu.memory_space<vmem>>, vector<480x32xbf16>
    %cst_11 = arith.constant dense<0.000000e+00> : vector<128x32xf32>
    %39 = tpu.matmul %37, %38, %cst_11 {dimension_numbers = #tpu.dot_dimension_numbers<[1], [0], [0], [1], [0, 0, 1, 1], [], []>} : vector<128x480xbf16>, vector<480x32xbf16>, vector<128x32xf32> -> vector<128x32xf32>
    %c0_12 = arith.constant 0 : index
    %c0_13 = arith.constant 0 : index
    %40 = vector.load %arg10[%c0_12, %c0_13] : memref<128x32xf32, #tpu.memory_space<vmem>>, vector<128x32xf32>
    tpu.vector_store %arg10[%c0_12, %c0_13], %20 {strides = array<i32>} : memref<128x32xf32, #tpu.memory_space<vmem>>, vector<128x32xf32>,
    %c0_14 = arith.constant 0 : index
    %c0_15 = arith.constant 0 : index
    %41 = vector.load %arg11[%c0_14, %c0_15] : memref<128x32xf32, #tpu.memory_space<vmem>>, vector<128x32xf32>
    tpu.vector_store %arg11[%c0_14, %c0_15], %39 {strides = array<i32>} : memref<128x32xf32, #tpu.memory_space<vmem>>, vector<128x32xf32>,
    %42 = arith.truncf %20 : vector<128x32xf32> to vector<128x32xbf16>
    %c0_16 = arith.constant 0 : index
    %c0_17 = arith.constant 0 : index
    %43 = vector.load %arg5[%c0_16, %c0_17] : memref<32x32xbf16, #tpu.memory_space<vmem>>, vector<32x32xbf16>
    %cst_18 = arith.constant dense<0.000000e+00> : vector<128x32xf32>
    %44 = tpu.matmul %42, %43, %cst_18 {dimension_numbers = #tpu.dot_dimension_numbers<[1], [0], [0], [1], [0, 0, 1, 1], [], []>} : vector<128x32xbf16>, vector<32x32xbf16>, vector<128x32xf32> -> vector<128x32xf32>
    %45 = arith.truncf %39 : vector<128x32xf32> to vector<128x32xbf16>
    %c0_19 = arith.constant 0 : index
    %c0_20 = arith.constant 0 : index
    %46 = vector.load %arg6[%c0_19, %c0_20] : memref<32x32xbf16, #tpu.memory_space<vmem>>, vector<32x32xbf16>
    %cst_21 = arith.constant dense<0.000000e+00> : vector<128x32xf32>
    %47 = tpu.matmul %45, %46, %cst_21 {dimension_numbers = #tpu.dot_dimension_numbers<[1], [0], [0], [1], [0, 0, 1, 1], [], []>} : vector<128x32xbf16>, vector<32x32xbf16>, vector<128x32xf32> -> vector<128x32xf32>
    %48 = arith.addf %44, %47 : vector<128x32xf32>
    %c0_22 = arith.constant 0 : index
    %c0_23 = arith.constant 0 : index
    %49 = vector.load %arg7[%c0_22, %c0_23] : memref<1x32xf32, #tpu.memory_space<vmem>>, vector<1x32xf32>
    %50 = vector.broadcast %49 : vector<1x32xf32> to vector<128x32xf32>
    %51 = arith.addf %48, %50 : vector<128x32xf32>
    %cst_24 = arith.constant 0.000000e+00 : f32
    %52 = vector.broadcast %cst_24 : f32 to vector<128x32xf32>
    %53 = arith.maximumf %51, %52 : vector<128x32xf32>
    %c0_25 = arith.constant 0 : index
    %c0_26 = arith.constant 0 : index
    %54 = vector.load %arg8[%c0_25, %c0_26] : memref<1x32xf32, #tpu.memory_space<vmem>>, vector<1x32xf32>
    %55 = vector.broadcast %54 : vector<1x32xf32> to vector<128x32xf32>
    %56 = arith.mulf %53, %55 : vector<128x32xf32>
    %cst_27 = arith.constant dense<0.000000e+00> : vector<128xf32>
    %57 = vector.multi_reduction <add>, %56, %cst_27 [1] : vector<128x32xf32> to vector<128xf32>
    %58 = vector.shape_cast %57 : vector<128xf32> to vector<1x128xf32>
    %c0_28 = arith.constant 0 : index
    %c0_29 = arith.constant 0 : index
    %59 = vector.load %arg9[%c0_28, %c0_29] : memref<1x128xf32, #tpu.memory_space<vmem>>, vector<1x128xf32>
    tpu.vector_store %arg9[%c0_28, %c0_29], %58 {strides = array<i32>} : memref<1x128xf32, #tpu.memory_space<vmem>>, vector<1x128xf32>,
    return
  }
  func.func @transform_0(%arg0: i32) -> (i32, i32) {
    %c0_i32 = arith.constant 0 : i32
    %c0_i32_0 = arith.constant 0 : i32
    return %arg0, %c0_i32 : i32, i32
  }
  func.func @transform_1(%arg0: i32) -> (i32, i32) {
    %c0_i32 = arith.constant 0 : i32
    %c0_i32_0 = arith.constant 0 : i32
    return %arg0, %c0_i32 : i32, i32
  }
  func.func @transform_2(%arg0: i32) -> (i32, i32) {
    %c0_i32 = arith.constant 0 : i32
    %c0_i32_0 = arith.constant 0 : i32
    %c0_i32_1 = arith.constant 0 : i32
    return %c0_i32, %c0_i32_0 : i32, i32
  }
  func.func @transform_3(%arg0: i32) -> (i32, i32) {
    %c0_i32 = arith.constant 0 : i32
    %c0_i32_0 = arith.constant 0 : i32
    %c0_i32_1 = arith.constant 0 : i32
    return %c0_i32, %c0_i32_0 : i32, i32
  }
  func.func @transform_4(%arg0: i32) -> (i32, i32) {
    %c0_i32 = arith.constant 0 : i32
    %c0_i32_0 = arith.constant 0 : i32
    %c0_i32_1 = arith.constant 0 : i32
    return %c0_i32, %c0_i32_0 : i32, i32
  }
  func.func @transform_5(%arg0: i32) -> (i32, i32) {
    %c0_i32 = arith.constant 0 : i32
    %c0_i32_0 = arith.constant 0 : i32
    %c0_i32_1 = arith.constant 0 : i32
    return %c0_i32, %c0_i32_0 : i32, i32
  }
  func.func @transform_6(%arg0: i32) -> (i32, i32) {
    %c0_i32 = arith.constant 0 : i32
    %c0_i32_0 = arith.constant 0 : i32
    %c0_i32_1 = arith.constant 0 : i32
    return %c0_i32, %c0_i32_0 : i32, i32
  }
  func.func @transform_7(%arg0: i32) -> (i32, i32) {
    %c0_i32 = arith.constant 0 : i32
    %c0_i32_0 = arith.constant 0 : i32
    %c0_i32_1 = arith.constant 0 : i32
    return %c0_i32, %c0_i32_0 : i32, i32
  }
  func.func @transform_8(%arg0: i32) -> (i32, i32) {
    %c0_i32 = arith.constant 0 : i32
    %c0_i32_0 = arith.constant 0 : i32
    return %c0_i32, %arg0 : i32, i32
  }
  func.func @transform_9(%arg0: i32) -> (i32, i32) {
    %c0_i32 = arith.constant 0 : i32
    %c0_i32_0 = arith.constant 0 : i32
    return %arg0, %c0_i32 : i32, i32
  }
  func.func @transform_10(%arg0: i32) -> (i32, i32) {
    %c0_i32 = arith.constant 0 : i32
    %c0_i32_0 = arith.constant 0 : i32
    return %arg0, %c0_i32 : i32, i32
  }
}

</mosaic_0001>

<llo_original>
// kernel: tpu_custom_call.1
$region0: #{tpu_custom_call.1}
  #allocation0 [shape = 'u32[]', space=smem, size = 0x4, offset = 0x4, fixed_abs, tag = 'smem constant byte address 0x4 - core index']
  #allocation1 [shape = 'u32[144,128]{1,0:T(1,128)}', space=vmem, size = 0x12000, scoped, tag = 'internal scratch']
  %s0 = inlined_call_operand.vmem [shape: s32[256,1], index: 0, kind: input, shape index: {}]
  %s1 = inlined_call_operand.vmem [shape: s32[256,1], index: 1, kind: input, shape index: {}]
  %s2 = inlined_call_operand.vmem [shape: bf16[288,32], index: 2, kind: input, shape index: {}]
  %s3 = inlined_call_operand.vmem [shape: bf16[480,32], index: 3, kind: input, shape index: {}]
  %s4 = inlined_call_operand.vmem [shape: bf16[32,32], index: 4, kind: input, shape index: {}]
  %s5 = inlined_call_operand.vmem [shape: bf16[32,32], index: 5, kind: input, shape index: {}]
  %s6 = inlined_call_operand.vmem [shape: f32[1,32], index: 6, kind: input, shape index: {}]
  %s7 = inlined_call_operand.vmem [shape: f32[1,32], index: 7, kind: input, shape index: {}]
  %s8 = inlined_call_operand.hbm [shape: f32[1,256], index: 8, kind: output, shape index: {0}]
  %s9 = inlined_call_operand.vmem [shape: f32[256,32], index: 9, kind: output, shape index: {1}]
  %s10 = inlined_call_operand.vmem [shape: f32[256,32], index: 10, kind: output, shape index: {2}]
  %11 = xla_tuple %s8, %s9, %s10
  %s12 = sld [smem:[#allocation0]]
  $region81: #{tpu_custom_call.1} parent=0
    _
  %s14 = ssub.s32 1, %s12
  %s15 = scalar_select 0, %s14, %s12
  $region1: #{tpu_custom_call.1} parent=0
    #allocation2 [shape = 'u8[1024]{0}', space=vmem, size = 0x400, scoped, tag = 'output window, operand 0']
    #allocation3 [shape = 's32[2]{0}', space=sflag, size = 0x8, scoped, tag = 'scoped memory for tpu_custom_call.1']
    %16 = vsyncpa [#allocation3], 0
    %s17 = scalar_lea.sflag [#allocation3], 1
    %18 = vsyncpa %s17, 0
    loop: start=0, step=1, limit=4
    $region2: #{tpu_custom_call.1} parent=1 // loop_pre_header
      _
    $region3: #{tpu_custom_call.1} parent=1 // loop_header
      %s20 = sphi 0, %s24
      %p21 = scmp.ge.s32.totalorder %s20, 4
      %s30 = sphi 0, %s32
      %s33 = sphi 0, %s30
      %s34 = sphi 0, %s33
      %s50 = sphi 0, %s34
      %s56 = sphi 0, %s58
      %s59 = sphi 0, %s56
      %s60 = sphi 0, %s59
      %s76 = sphi 0, %s60
      %s80 = sphi 0, %s80
      %s82 = sphi 0, %s80
      %s83 = sphi 0, %s82
      %s97 = sphi 0, %s83
      %s101 = sphi 0, %s101
      %s103 = sphi 0, %s101
      %s104 = sphi 0, %s103
      %s118 = sphi 0, %s104
      %s122 = sphi 0, %s122
      %s124 = sphi 0, %s122
      %s125 = sphi 0, %s124
      %s139 = sphi 0, %s125
      %s143 = sphi 0, %s143
      %s145 = sphi 0, %s143
      %s146 = sphi 0, %s145
      %s160 = sphi 0, %s146
      %s164 = sphi 0, %s164
      %s166 = sphi 0, %s164
      %s167 = sphi 0, %s166
      %s181 = sphi 0, %s167
      %s185 = sphi 0, %s185
      %s187 = sphi 0, %s185
      %s188 = sphi 0, %s187
      %s202 = sphi 0, %s188
      %s208 = sphi 0, %s210
      %s211 = sphi 0, %s208
      %s212 = sphi 0, %s211
      %s228 = sphi 0, %s212
      %s234 = sphi 0, %s236
      %s237 = sphi 0, %s234
      %s238 = sphi 0, %s237
      %s254 = sphi 0, %s238
      %s260 = sphi 0, %s262
      %s263 = sphi 0, %s260
      %s264 = sphi 0, %s263
      %s280 = sphi 0, %s264
    $region4: #{tpu_custom_call.1} parent=1 // loop_header_branch
      %23 = sbr.rel (%p21) target = $region8
    $region5: #{tpu_custom_call.1} parent=1 // loop_body
      %s25 = ssub.s32 %s20, 1
      %s26 = ssub.s32 %s20, 2
      %s27 = sadd.s32 %s20, 1
      %s28 = ssub.s32 %s20, %s27
      %p29 = scmp.eq.s32.totalorder %s28, 0
      %s31 = sadd.s32 %s30, 1
      %s32 = scalar_select %p29, %s30, %s31
      %p35 = pneg %p29
      %p36 = scmp.eq.s32.totalorder %s20, 1
      %p37 = por %p35, %p36
      %p38 = scmp.ne.s32.totalorder %s30, %s33
      %p39 = scmp.eq.s32.totalorder %s20, 0
      %p40 = por %p38, %p39
      %p41 = scmp.ne.s32.totalorder %s30, %s33
      %p42 = scmp.eq.s32.totalorder %s25, 1
      %p43 = por %p41, %p42
      %p44 = scmp.ne.s32.totalorder %s33, %s34
      %p45 = scmp.eq.s32.totalorder %s25, 0
      %p46 = por %p44, %p45
      %p47 = scmp.ne.s32.totalorder %s33, %s34
      %p48 = scmp.eq.s32.totalorder %s26, 1
      %p49 = por %p47, %p48
      %p51 = scmp.ne.s32.totalorder %s34, %s50
      %p52 = scmp.eq.s32.totalorder %s26, 0
      %p53 = por %p51, %p52
      %s54 = ssub.s32 %s20, %s27
      %p55 = scmp.eq.s32.totalorder %s54, 0
      %s57 = sadd.s32 %s56, 1
      %s58 = scalar_select %p55, %s56, %s57
      %p61 = pneg %p55
      %p62 = scmp.eq.s32.totalorder %s20, 1
      %p63 = por %p61, %p62
      %p64 = scmp.ne.s32.totalorder %s56, %s59
      %p65 = scmp.eq.s32.totalorder %s20, 0
      %p66 = por %p64, %p65
      %p67 = scmp.ne.s32.totalorder %s56, %s59
      %p68 = scmp.eq.s32.totalorder %s25, 1
      %p69 = por %p67, %p68
      %p70 = scmp.ne.s32.totalorder %s59, %s60
      %p71 = scmp.eq.s32.totalorder %s25, 0
      %p72 = por %p70, %p71
      %p73 = scmp.ne.s32.totalorder %s59, %s60
      %p74 = scmp.eq.s32.totalorder %s26, 1
      %p75 = por %p73, %p74
      %p77 = scmp.ne.s32.totalorder %s60, %s76
      %p78 = scmp.eq.s32.totalorder %s26, 0
      %p79 = por %p77, %p78
      %s81 = sadd.s32 %s80, 1
      %p84 = scmp.eq.s32.totalorder %s20, 1
      %p85 = scmp.ne.s32.totalorder %s80, %s82
      %p86 = scmp.eq.s32.totalorder %s20, 0
      %p87 = por %p85, %p86
      %p88 = scmp.ne.s32.totalorder %s80, %s82
      %p89 = scmp.eq.s32.totalorder %s25, 1
      %p90 = por %p88, %p89
      %p91 = scmp.ne.s32.totalorder %s82, %s83
      %p92 = scmp.eq.s32.totalorder %s25, 0
      %p93 = por %p91, %p92
      %p94 = scmp.ne.s32.totalorder %s82, %s83
      %p95 = scmp.eq.s32.totalorder %s26, 1
      %p96 = por %p94, %p95
      %p98 = scmp.ne.s32.totalorder %s83, %s97
      %p99 = scmp.eq.s32.totalorder %s26, 0
      %p100 = por %p98, %p99
      %s102 = sadd.s32 %s101, 1
      %p105 = scmp.eq.s32.totalorder %s20, 1
      %p106 = scmp.ne.s32.totalorder %s101, %s103
      %p107 = scmp.eq.s32.totalorder %s20, 0
      %p108 = por %p106, %p107
      %p109 = scmp.ne.s32.totalorder %s101, %s103
      %p110 = scmp.eq.s32.totalorder %s25, 1
      %p111 = por %p109, %p110
      %p112 = scmp.ne.s32.totalorder %s103, %s104
      %p113 = scmp.eq.s32.totalorder %s25, 0
      %p114 = por %p112, %p113
      %p115 = scmp.ne.s32.totalorder %s103, %s104
      %p116 = scmp.eq.s32.totalorder %s26, 1
      %p117 = por %p115, %p116
      %p119 = scmp.ne.s32.totalorder %s104, %s118
      %p120 = scmp.eq.s32.totalorder %s26, 0
      %p121 = por %p119, %p120
      %s123 = sadd.s32 %s122, 1
      %p126 = scmp.eq.s32.totalorder %s20, 1
      %p127 = scmp.ne.s32.totalorder %s122, %s124
      %p128 = scmp.eq.s32.totalorder %s20, 0
      %p129 = por %p127, %p128
      %p130 = scmp.ne.s32.totalorder %s122, %s124
      %p131 = scmp.eq.s32.totalorder %s25, 1
      %p132 = por %p130, %p131
      %p133 = scmp.ne.s32.totalorder %s124, %s125
      %p134 = scmp.eq.s32.totalorder %s25, 0
      %p135 = por %p133, %p134
      %p136 = scmp.ne.s32.totalorder %s124, %s125
      %p137 = scmp.eq.s32.totalorder %s26, 1
      %p138 = por %p136, %p137
      %p140 = scmp.ne.s32.totalorder %s125, %s139
      %p141 = scmp.eq.s32.totalorder %s26, 0
      %p142 = por %p140, %p141
      %s144 = sadd.s32 %s143, 1
      %p147 = scmp.eq.s32.totalorder %s20, 1
      %p148 = scmp.ne.s32.totalorder %s143, %s145
      %p149 = scmp.eq.s32.totalorder %s20, 0
      %p150 = por %p148, %p149
      %p151 = scmp.ne.s32.totalorder %s143, %s145
      %p152 = scmp.eq.s32.totalorder %s25, 1
      %p153 = por %p151, %p152
      %p154 = scmp.ne.s32.totalorder %s145, %s146
      %p155 = scmp.eq.s32.totalorder %s25, 0
      %p156 = por %p154, %p155
      %p157 = scmp.ne.s32.totalorder %s145, %s146
      %p158 = scmp.eq.s32.totalorder %s26, 1
      %p159 = por %p157, %p158
      %p161 = scmp.ne.s32.totalorder %s146, %s160
      %p162 = scmp.eq.s32.totalorder %s26, 0
      %p163 = por %p161, %p162
      %s165 = sadd.s32 %s164, 1
      %p168 = scmp.eq.s32.totalorder %s20, 1
      %p169 = scmp.ne.s32.totalorder %s164, %s166
      %p170 = scmp.eq.s32.totalorder %s20, 0
      %p171 = por %p169, %p170
      %p172 = scmp.ne.s32.totalorder %s164, %s166
      %p173 = scmp.eq.s32.totalorder %s25, 1
      %p174 = por %p172, %p173
      %p175 = scmp.ne.s32.totalorder %s166, %s167
      %p176 = scmp.eq.s32.totalorder %s25, 0
      %p177 = por %p175, %p176
      %p178 = scmp.ne.s32.totalorder %s166, %s167
      %p179 = scmp.eq.s32.totalorder %s26, 1
      %p180 = por %p178, %p179
      %p182 = scmp.ne.s32.totalorder %s167, %s181
      %p183 = scmp.eq.s32.totalorder %s26, 0
      %p184 = por %p182, %p183
      %s186 = sadd.s32 %s185, 1
      %p189 = scmp.eq.s32.totalorder %s20, 1
      %p190 = scmp.ne.s32.totalorder %s185, %s187
      %p191 = scmp.eq.s32.totalorder %s20, 0
      %p192 = por %p190, %p191
      %p193 = scmp.ne.s32.totalorder %s185, %s187
      %p194 = scmp.eq.s32.totalorder %s25, 1
      %p195 = por %p193, %p194
      %p196 = scmp.ne.s32.totalorder %s187, %s188
      %p197 = scmp.eq.s32.totalorder %s25, 0
      %p198 = por %p196, %p197
      %p199 = scmp.ne.s32.totalorder %s187, %s188
      %p200 = scmp.eq.s32.totalorder %s26, 1
      %p201 = por %p199, %p200
      %p203 = scmp.ne.s32.totalorder %s188, %s202
      %p204 = scmp.eq.s32.totalorder %s26, 0
      %p205 = por %p203, %p204
      %s206 = ssub.s32 %s20, %s27
      %p207 = scmp.eq.s32.totalorder %s206, 0
      %s209 = sadd.s32 %s208, 1
      %s210 = scalar_select %p207, %s208, %s209
      %p213 = pneg %p207
      %p214 = scmp.eq.s32.totalorder %s20, 1
      %p215 = por %p213, %p214
      %p216 = scmp.ne.s32.totalorder %s208, %s211
      %p217 = scmp.eq.s32.totalorder %s20, 0
      %p218 = por %p216, %p217
      %p219 = scmp.ne.s32.totalorder %s208, %s211
      %p220 = scmp.eq.s32.totalorder %s25, 1
      %p221 = por %p219, %p220
      %p222 = scmp.ne.s32.totalorder %s211, %s212
      %p223 = scmp.eq.s32.totalorder %s25, 0
      %p224 = por %p222, %p223
      %p225 = scmp.ne.s32.totalorder %s211, %s212
      %p226 = scmp.eq.s32.totalorder %s26, 1
      %p227 = por %p225, %p226
      %p229 = scmp.ne.s32.totalorder %s212, %s228
      %p230 = scmp.eq.s32.totalorder %s26, 0
      %p231 = por %p229, %p230
      %s232 = ssub.s32 %s20, %s27
      %p233 = scmp.eq.s32.totalorder %s232, 0
      %s235 = sadd.s32 %s234, 1
      %s236 = scalar_select %p233, %s234, %s235
      %p239 = pneg %p233
      %p240 = scmp.eq.s32.totalorder %s20, 1
      %p241 = por %p239, %p240
      %p242 = scmp.ne.s32.totalorder %s234, %s237
      %p243 = scmp.eq.s32.totalorder %s20, 0
      %p244 = por %p242, %p243
      %p245 = scmp.ne.s32.totalorder %s234, %s237
      %p246 = scmp.eq.s32.totalorder %s25, 1
      %p247 = por %p245, %p246
      %p248 = scmp.ne.s32.totalorder %s237, %s238
      %p249 = scmp.eq.s32.totalorder %s25, 0
      %p250 = por %p248, %p249
      %p251 = scmp.ne.s32.totalorder %s237, %s238
      %p252 = scmp.eq.s32.totalorder %s26, 1
      %p253 = por %p251, %p252
      %p255 = scmp.ne.s32.totalorder %s238, %s254
      %p256 = scmp.eq.s32.totalorder %s26, 0
      %p257 = por %p255, %p256
      %s258 = ssub.s32 %s20, %s27
      %p259 = scmp.eq.s32.totalorder %s258, 0
      %s261 = sadd.s32 %s260, 1
      %s262 = scalar_select %p259, %s260, %s261
      %p265 = pneg %p259
      %p266 = scmp.eq.s32.totalorder %s20, 1
      %p267 = por %p265, %p266
      %p268 = scmp.ne.s32.totalorder %s260, %s263
      %p269 = scmp.eq.s32.totalorder %s20, 0
      %p270 = por %p268, %p269
      %p271 = scmp.ne.s32.totalorder %s260, %s263
      %p272 = scmp.eq.s32.totalorder %s25, 1
      %p273 = por %p271, %p272
      %p274 = scmp.ne.s32.totalorder %s263, %s264
      %p275 = scmp.eq.s32.totalorder %s25, 0
      %p276 = por %p274, %p275
      %p277 = scmp.ne.s32.totalorder %s263, %s264
      %p278 = scmp.eq.s32.totalorder %s26, 1
      %p279 = por %p277, %p278
      %p281 = scmp.ne.s32.totalorder %s264, %s280
      %p282 = scmp.eq.s32.totalorder %s26, 0
      %p283 = por %p281, %p282
      %p284 = scmp.le.s32.totalorder 1, %s20
      %p285 = scmp.lt.s32.totalorder %s20, 3
      %p286 = pnand %p284, %p285
      %p287 = pneg %p286
      // Predicated region
      $region9: #{tpu_custom_call.1} parent=5 // pred_check
        _
      $region10: #{tpu_custom_call.1} parent=5 // pred_check_branch
        %289 = sbr.rel (%p286) target = $region12
      $region11: #{tpu_custom_call.1} parent=5 // pred_region
        %s290 = ssub.s32 %s20, 1
        // Predicated region
        $region13: #{tpu_custom_call.1} parent=11 // pred_check
          %p291 = pneg %p93
        $region14: #{tpu_custom_call.1} parent=11 // pred_check_branch
          %293 = sbr.rel (%p291) target = $region16
        $region15: #{tpu_custom_call.1} parent=11 // pred_region
          _
        $region16: #{tpu_custom_call.1} parent=11 // pred_fallthru
          _
        // Predicated region
        $region17: #{tpu_custom_call.1} parent=11 // pred_check
          %p294 = pneg %p114
        $region18: #{tpu_custom_call.1} parent=11 // pred_check_branch
          %296 = sbr.rel (%p294) target = $region20
        $region19: #{tpu_custom_call.1} parent=11 // pred_region
          _
        $region20: #{tpu_custom_call.1} parent=11 // pred_fallthru
          _
        // Predicated region
        $region21: #{tpu_custom_call.1} parent=11 // pred_check
          %p297 = pneg %p135
        $region22: #{tpu_custom_call.1} parent=11 // pred_check_branch
          %299 = sbr.rel (%p297) target = $region24
        $region23: #{tpu_custom_call.1} parent=11 // pred_region
          _
        $region24: #{tpu_custom_call.1} parent=11 // pred_fallthru
          _
        // Predicated region
        $region25: #{tpu_custom_call.1} parent=11 // pred_check
          %p300 = pneg %p156
        $region26: #{tpu_custom_call.1} parent=11 // pred_check_branch
          %302 = sbr.rel (%p300) target = $region28
        $region27: #{tpu_custom_call.1} parent=11 // pred_region
          _
        $region28: #{tpu_custom_call.1} parent=11 // pred_fallthru
          _
        // Predicated region
        $region29: #{tpu_custom_call.1} parent=11 // pred_check
          %p303 = pneg %p177
        $region30: #{tpu_custom_call.1} parent=11 // pred_check_branch
          %305 = sbr.rel (%p303) target = $region32
        $region31: #{tpu_custom_call.1} parent=11 // pred_region
          _
        $region32: #{tpu_custom_call.1} parent=11 // pred_fallthru
          _
        // Predicated region
        $region33: #{tpu_custom_call.1} parent=11 // pred_check
          %p306 = pneg %p198
        $region34: #{tpu_custom_call.1} parent=11 // pred_check_branch
          %308 = sbr.rel (%p306) target = $region36
        $region35: #{tpu_custom_call.1} parent=11 // pred_region
          _
        $region36: #{tpu_custom_call.1} parent=11 // pred_fallthru
          _
      $region12: #{tpu_custom_call.1} parent=5 // pred_fallthru
        _
      %p309 = scmp.lt.s32.totalorder %s20, 2
      // Predicated region
      $region37: #{tpu_custom_call.1} parent=5 // pred_check
        %p310 = pneg %p309
      $region38: #{tpu_custom_call.1} parent=5 // pred_check_branch
        %312 = sbr.rel (%p310) target = $region40
      $region39: #{tpu_custom_call.1} parent=5 // pred_region
        // Predicated region
        $region41: #{tpu_custom_call.1} parent=39 // pred_check
          %p313 = pneg %p40
        $region42: #{tpu_custom_call.1} parent=39 // pred_check_branch
          %315 = sbr.rel (%p313) target = $region44
        $region43: #{tpu_custom_call.1} parent=39 // pred_region
          %s316 = smul.u32 16, %s20
          %p317 = scmp.lt.s32.totalorder %s316, 31
          %s318 = scalar_select %p317, %s316, 31
          %s319 = smul.addr %s318, 8
          %s320 = scalar_lea.vmem %s0, %s319
          %s321 = smul.u32 16, %s20
        $region44: #{tpu_custom_call.1} parent=39 // pred_fallthru
          _
        // Predicated region
        $region45: #{tpu_custom_call.1} parent=39 // pred_check
          %p322 = pneg %p66
        $region46: #{tpu_custom_call.1} parent=39 // pred_check_branch
          %324 = sbr.rel (%p322) target = $region48
        $region47: #{tpu_custom_call.1} parent=39 // pred_region
          %s325 = smul.u32 16, %s20
          %p326 = scmp.lt.s32.totalorder %s325, 31
          %s327 = scalar_select %p326, %s325, 31
          %s328 = smul.addr %s327, 8
          %s329 = scalar_lea.vmem %s1, %s328
          %s330 = smul.u32 16, %s20
        $region48: #{tpu_custom_call.1} parent=39 // pred_fallthru
          _
      $region40: #{tpu_custom_call.1} parent=5 // pred_fallthru
        _
      %p331 = scmp.le.s32.totalorder 1, %s20
      %p332 = scmp.lt.s32.totalorder %s20, 3
      %p333 = pnand %p331, %p332
      %p334 = pneg %p333
      // Predicated region
      $region49: #{tpu_custom_call.1} parent=5 // pred_check
        _
      $region50: #{tpu_custom_call.1} parent=5 // pred_check_branch
        %336 = sbr.rel (%p333) target = $region52
      $region51: #{tpu_custom_call.1} parent=5 // pred_region
        %s337 = ssub.s32 %s20, 1
        %s338 = smul.u32 16, %s25
        %p339 = scmp.lt.s32.totalorder %s338, 31
        %s340 = scalar_select %p339, %s338, 31
        %s341 = smul.addr %s340, 8
        %s342 = scalar_lea.vmem %s0, %s341
        %p343 = pneg %p46
        %p344 = pneg %p43
        %s345 = smul.u32 16, %s25
        %p346 = scmp.lt.s32.totalorder %s345, 31
        %s347 = scalar_select %p346, %s345, 31
        %s348 = smul.addr %s347, 8
        %s349 = scalar_lea.vmem %s1, %s348
        %p350 = pneg %p72
        %p351 = pneg %p69
        %p352 = pneg %p93
        %p353 = pneg %p90
        %p354 = pneg %p114
        %p355 = pneg %p111
        %p356 = pneg %p135
        %p357 = pneg %p132
        %p358 = pneg %p156
        %p359 = pneg %p153
        %p360 = pneg %p177
        %p361 = pneg %p174
        %p362 = pneg %p198
        %p363 = pneg %p195
        %p364 = pneg %p224
        %p365 = pneg %p221
        %s366 = sand.u32 %s211, 1
        %s367 = scalar_lea.sflag [#allocation3], %s366
        %s368 = sand.u32 %s211, 1
        %s369 = scalar_lea.vmem [#allocation2], %s368
        %p370 = pneg %p250
        %p371 = pneg %p247
        %s372 = smul.u32 16, %s25
        %p373 = scmp.lt.s32.totalorder %s372, 31
        %s374 = scalar_select %p373, %s372, 31
        %s375 = smul.addr %s374, 8
        %s376 = scalar_lea.vmem %s9, %s375
        %p377 = pneg %p276
        %p378 = pneg %p273
        %s379 = smul.u32 16, %s25
        %p380 = scmp.lt.s32.totalorder %s379, 31
        %s381 = scalar_select %p380, %s379, 31
        %s382 = smul.addr %s381, 8
        %s383 = scalar_lea.vmem %s10, %s382
        %s384 = smul.u32 16, %s25
        %p385 = scmp.lt.s32.totalorder %s384, 31
        %s386 = scalar_select %p385, %s384, 31
        %s387 = smul.addr %s386, 8
        %s388 = scalar_lea.vmem %s0, %s387
        %s389 = smul.u32 16, %s25
        %s390 = smul.u32 16, %s25
        %p391 = scmp.lt.s32.totalorder %s390, 31
        %s392 = scalar_select %p391, %s390, 31
        %s393 = smul.addr %s392, 8
        %s394 = scalar_lea.vmem %s1, %s393
        %s395 = smul.u32 16, %s25
        %s396 = smul.u32 16, %s25
        %p397 = scmp.lt.s32.totalorder %s396, 31
        %s398 = scalar_select %p397, %s396, 31
        %s399 = smul.addr %s398, 8
        %s400 = scalar_lea.vmem %s9, %s399
        %s401 = smul.u32 16, %s25
        %s402 = smul.u32 16, %s25
        %p403 = scmp.lt.s32.totalorder %s402, 31
        %s404 = scalar_select %p403, %s402, 31
        %s405 = smul.addr %s404, 8
        %s406 = scalar_lea.vmem %s10, %s405
        %s407 = smul.u32 16, %s25
        %v409 = vld [vmem:[%s388] sm:$0xff]
        %v410 = vld [vmem:[%s388 + $0x8] sm:$0xff]
        %v411 = vld [vmem:[%s388 + $0x10] sm:$0xff]
        %v412 = vld [vmem:[%s388 + $0x18] sm:$0xff]
        %v413 = vld [vmem:[%s388 + $0x20] sm:$0xff]
        %v414 = vld [vmem:[%s388 + $0x28] sm:$0xff]
        %v415 = vld [vmem:[%s388 + $0x30] sm:$0xff]
        %v416 = vld [vmem:[%s388 + $0x38] sm:$0xff]
        %v417 = vld [vmem:[%s388 + $0x40] sm:$0xff]
        %v418 = vld [vmem:[%s388 + $0x48] sm:$0xff]
        %v419 = vld [vmem:[%s388 + $0x50] sm:$0xff]
        %v420 = vld [vmem:[%s388 + $0x58] sm:$0xff]
        %v421 = vld [vmem:[%s388 + $0x60] sm:$0xff]
        %v422 = vld [vmem:[%s388 + $0x68] sm:$0xff]
        %v423 = vld [vmem:[%s388 + $0x70] sm:$0xff]
        %v424 = vld [vmem:[%s388 + $0x78] sm:$0xff]
        %v425 = vld [vmem:[%s394] sm:$0xff]
        %v426 = vld [vmem:[%s394 + $0x8] sm:$0xff]
        %v427 = vld [vmem:[%s394 + $0x10] sm:$0xff]
        %v428 = vld [vmem:[%s394 + $0x18] sm:$0xff]
        %v429 = vld [vmem:[%s394 + $0x20] sm:$0xff]
        %v430 = vld [vmem:[%s394 + $0x28] sm:$0xff]
        %v431 = vld [vmem:[%s394 + $0x30] sm:$0xff]
        %v432 = vld [vmem:[%s394 + $0x38] sm:$0xff]
        %v433 = vld [vmem:[%s394 + $0x40] sm:$0xff]
        %v434 = vld [vmem:[%s394 + $0x48] sm:$0xff]
        %v435 = vld [vmem:[%s394 + $0x50] sm:$0xff]
        %v436 = vld [vmem:[%s394 + $0x58] sm:$0xff]
        %v437 = vld [vmem:[%s394 + $0x60] sm:$0xff]
        %v438 = vld [vmem:[%s394 + $0x68] sm:$0xff]
        %v439 = vld [vmem:[%s394 + $0x70] sm:$0xff]
        %v440 = vld [vmem:[%s394 + $0x78] sm:$0xff]
        %v441 = vlaneseq
        %v442 = vand.u32 %v441, 127
        %v443 = vadd.s32 %v442, 128
        %v444 = vadd.s32 %v442, 256
        %445 = vset.pattern.permute.xlu0 0
        %446 = vperm.xlu0 %445, %v409
        %v447 = vpop.permute.xlu0 %446
        %448 = vset.pattern.permute.xlu0 0
        %449 = vperm.xlu0 %448, %v410
        %v450 = vpop.permute.xlu0 %449
        %451 = vset.pattern.permute.xlu0 0
        %452 = vperm.xlu0 %451, %v411
        %v453 = vpop.permute.xlu0 %452
        %454 = vset.pattern.permute.xlu0 0
        %455 = vperm.xlu0 %454, %v412
        %v456 = vpop.permute.xlu0 %455
        %457 = vset.pattern.permute.xlu0 0
        %458 = vperm.xlu0 %457, %v413
        %v459 = vpop.permute.xlu0 %458
        %460 = vset.pattern.permute.xlu0 0
        %461 = vperm.xlu0 %460, %v414
        %v462 = vpop.permute.xlu0 %461
        %463 = vset.pattern.permute.xlu0 0
        %464 = vperm.xlu0 %463, %v415
        %v465 = vpop.permute.xlu0 %464
        %466 = vset.pattern.permute.xlu0 0
        %467 = vperm.xlu0 %466, %v416
        %v468 = vpop.permute.xlu0 %467
        %469 = vset.pattern.permute.xlu0 0
        %470 = vperm.xlu0 %469, %v417
        %v471 = vpop.permute.xlu0 %470
        %472 = vset.pattern.permute.xlu0 0
        %473 = vperm.xlu0 %472, %v418
        %v474 = vpop.permute.xlu0 %473
        %475 = vset.pattern.permute.xlu0 0
        %476 = vperm.xlu0 %475, %v419
        %v477 = vpop.permute.xlu0 %476
        %478 = vset.pattern.permute.xlu0 0
        %479 = vperm.xlu0 %478, %v420
        %v480 = vpop.permute.xlu0 %479
        %481 = vset.pattern.permute.xlu0 0
        %482 = vperm.xlu0 %481, %v421
        %v483 = vpop.permute.xlu0 %482
        %484 = vset.pattern.permute.xlu0 0
        %485 = vperm.xlu0 %484, %v422
        %v486 = vpop.permute.xlu0 %485
        %487 = vset.pattern.permute.xlu0 0
        %488 = vperm.xlu0 %487, %v423
        %v489 = vpop.permute.xlu0 %488
        %490 = vset.pattern.permute.xlu0 0
        %491 = vperm.xlu0 %490, %v424
        %v492 = vpop.permute.xlu0 %491
        %vm493 = vcmp.eq.s32.totalorder %v442, %v447
        %vm494 = vcmp.eq.s32.totalorder %v443, %v447
        %vm495 = vcmp.eq.s32.totalorder %v444, %v447
        %vm496 = vcmp.eq.s32.totalorder %v442, %v450
        %vm497 = vcmp.eq.s32.totalorder %v443, %v450
        %vm498 = vcmp.eq.s32.totalorder %v444, %v450
        %vm499 = vcmp.eq.s32.totalorder %v442, %v453
        %vm500 = vcmp.eq.s32.totalorder %v443, %v453
        %vm501 = vcmp.eq.s32.totalorder %v444, %v453
        %vm502 = vcmp.eq.s32.totalorder %v442, %v456
        %vm503 = vcmp.eq.s32.totalorder %v443, %v456
        %vm504 = vcmp.eq.s32.totalorder %v444, %v456
        %vm505 = vcmp.eq.s32.totalorder %v442, %v459
        %vm506 = vcmp.eq.s32.totalorder %v443, %v459
        %vm507 = vcmp.eq.s32.totalorder %v444, %v459
        %vm508 = vcmp.eq.s32.totalorder %v442, %v462
        %vm509 = vcmp.eq.s32.totalorder %v443, %v462
        %vm510 = vcmp.eq.s32.totalorder %v444, %v462
        %vm511 = vcmp.eq.s32.totalorder %v442, %v465
        %vm512 = vcmp.eq.s32.totalorder %v443, %v465
        %vm513 = vcmp.eq.s32.totalorder %v444, %v465
        %vm514 = vcmp.eq.s32.totalorder %v442, %v468
        %vm515 = vcmp.eq.s32.totalorder %v443, %v468
        %vm516 = vcmp.eq.s32.totalorder %v444, %v468
        %vm517 = vcmp.eq.s32.totalorder %v442, %v471
        %vm518 = vcmp.eq.s32.totalorder %v443, %v471
        %vm519 = vcmp.eq.s32.totalorder %v444, %v471
        %vm520 = vcmp.eq.s32.totalorder %v442, %v474
        %vm521 = vcmp.eq.s32.totalorder %v443, %v474
        %vm522 = vcmp.eq.s32.totalorder %v444, %v474
        %vm523 = vcmp.eq.s32.totalorder %v442, %v477
        %vm524 = vcmp.eq.s32.totalorder %v443, %v477
        %vm525 = vcmp.eq.s32.totalorder %v444, %v477
        %vm526 = vcmp.eq.s32.totalorder %v442, %v480
        %vm527 = vcmp.eq.s32.totalorder %v443, %v480
        %vm528 = vcmp.eq.s32.totalorder %v444, %v480
        %vm529 = vcmp.eq.s32.totalorder %v442, %v483
        %vm530 = vcmp.eq.s32.totalorder %v443, %v483
        %vm531 = vcmp.eq.s32.totalorder %v444, %v483
        %vm532 = vcmp.eq.s32.totalorder %v442, %v486
        %vm533 = vcmp.eq.s32.totalorder %v443, %v486
        %vm534 = vcmp.eq.s32.totalorder %v444, %v486
        %vm535 = vcmp.eq.s32.totalorder %v442, %v489
        %vm536 = vcmp.eq.s32.totalorder %v443, %v489
        %vm537 = vcmp.eq.s32.totalorder %v444, %v489
        %vm538 = vcmp.eq.s32.totalorder %v442, %v492
        %vm539 = vcmp.eq.s32.totalorder %v443, %v492
        %vm540 = vcmp.eq.s32.totalorder %v444, %v492
        %v541 = vadd.s32 %v409, 96
        %v542 = vadd.s32 %v410, 96
        %v543 = vadd.s32 %v411, 96
        %v544 = vadd.s32 %v412, 96
        %v545 = vadd.s32 %v413, 96
        %v546 = vadd.s32 %v414, 96
        %v547 = vadd.s32 %v415, 96
        %v548 = vadd.s32 %v416, 96
        %v549 = vadd.s32 %v417, 96
        %v550 = vadd.s32 %v418, 96
        %v551 = vadd.s32 %v419, 96
        %v552 = vadd.s32 %v420, 96
        %v553 = vadd.s32 %v421, 96
        %v554 = vadd.s32 %v422, 96
        %v555 = vadd.s32 %v423, 96
        %v556 = vadd.s32 %v424, 96
        %557 = vset.pattern.permute.xlu0 0
        %558 = vperm.xlu0 %557, %v541
        %v559 = vpop.permute.xlu0 %558
        %560 = vset.pattern.permute.xlu0 0
        %561 = vperm.xlu0 %560, %v542
        %v562 = vpop.permute.xlu0 %561
        %563 = vset.pattern.permute.xlu0 0
        %564 = vperm.xlu0 %563, %v543
        %v565 = vpop.permute.xlu0 %564
        %566 = vset.pattern.permute.xlu0 0
        %567 = vperm.xlu0 %566, %v544
        %v568 = vpop.permute.xlu0 %567
        %569 = vset.pattern.permute.xlu0 0
        %570 = vperm.xlu0 %569, %v545
        %v571 = vpop.permute.xlu0 %570
        %572 = vset.pattern.permute.xlu0 0
        %573 = vperm.xlu0 %572, %v546
        %v574 = vpop.permute.xlu0 %573
        %575 = vset.pattern.permute.xlu0 0
        %576 = vperm.xlu0 %575, %v547
        %v577 = vpop.permute.xlu0 %576
        %578 = vset.pattern.permute.xlu0 0
        %579 = vperm.xlu0 %578, %v548
        %v580 = vpop.permute.xlu0 %579
        %581 = vset.pattern.permute.xlu0 0
        %582 = vperm.xlu0 %581, %v549
        %v583 = vpop.permute.xlu0 %582
        %584 = vset.pattern.permute.xlu0 0
        %585 = vperm.xlu0 %584, %v550
        %v586 = vpop.permute.xlu0 %585
        %587 = vset.pattern.permute.xlu0 0
        %588 = vperm.xlu0 %587, %v551
        %v589 = vpop.permute.xlu0 %588
        %590 = vset.pattern.permute.xlu0 0
        %591 = vperm.xlu0 %590, %v552
        %v592 = vpop.permute.xlu0 %591
        %593 = vset.pattern.permute.xlu0 0
        %594 = vperm.xlu0 %593, %v553
        %v595 = vpop.permute.xlu0 %594
        %596 = vset.pattern.permute.xlu0 0
        %597 = vperm.xlu0 %596, %v554
        %v598 = vpop.permute.xlu0 %597
        %599 = vset.pattern.permute.xlu0 0
        %600 = vperm.xlu0 %599, %v555
        %v601 = vpop.permute.xlu0 %600
        %602 = vset.pattern.permute.xlu0 0
        %603 = vperm.xlu0 %602, %v556
        %v604 = vpop.permute.xlu0 %603
        %vm605 = vcmp.eq.s32.totalorder %v442, %v559
        %vm606 = vcmp.eq.s32.totalorder %v443, %v559
        %vm607 = vcmp.eq.s32.totalorder %v444, %v559
        %vm608 = vcmp.eq.s32.totalorder %v442, %v562
        %vm609 = vcmp.eq.s32.totalorder %v443, %v562
        %vm610 = vcmp.eq.s32.totalorder %v444, %v562
        %vm611 = vcmp.eq.s32.totalorder %v442, %v565
        %vm612 = vcmp.eq.s32.totalorder %v443, %v565
        %vm613 = vcmp.eq.s32.totalorder %v444, %v565
        %vm614 = vcmp.eq.s32.totalorder %v442, %v568
        %vm615 = vcmp.eq.s32.totalorder %v443, %v568
        %vm616 = vcmp.eq.s32.totalorder %v444, %v568
        %vm617 = vcmp.eq.s32.totalorder %v442, %v571
        %vm618 = vcmp.eq.s32.totalorder %v443, %v571
        %vm619 = vcmp.eq.s32.totalorder %v444, %v571
        %vm620 = vcmp.eq.s32.totalorder %v442, %v574
        %vm621 = vcmp.eq.s32.totalorder %v443, %v574
        %vm622 = vcmp.eq.s32.totalorder %v444, %v574
        %vm623 = vcmp.eq.s32.totalorder %v442, %v577
        %vm624 = vcmp.eq.s32.totalorder %v443, %v577
        %vm625 = vcmp.eq.s32.totalorder %v444, %v577
        %vm626 = vcmp.eq.s32.totalorder %v442, %v580
        %vm627 = vcmp.eq.s32.totalorder %v443, %v580
        %vm628 = vcmp.eq.s32.totalorder %v444, %v580
        %vm629 = vcmp.eq.s32.totalorder %v442, %v583
        %vm630 = vcmp.eq.s32.totalorder %v443, %v583
        %vm631 = vcmp.eq.s32.totalorder %v444, %v583
        %vm632 = vcmp.eq.s32.totalorder %v442, %v586
        %vm633 = vcmp.eq.s32.totalorder %v443, %v586
        %vm634 = vcmp.eq.s32.totalorder %v444, %v586
        %vm635 = vcmp.eq.s32.totalorder %v442, %v589
        %vm636 = vcmp.eq.s32.totalorder %v443, %v589
        %vm637 = vcmp.eq.s32.totalorder %v444, %v589
        %vm638 = vcmp.eq.s32.totalorder %v442, %v592
        %vm639 = vcmp.eq.s32.totalorder %v443, %v592
        %vm640 = vcmp.eq.s32.totalorder %v444, %v592
        %vm641 = vcmp.eq.s32.totalorder %v442, %v595
        %vm642 = vcmp.eq.s32.totalorder %v443, %v595
        %vm643 = vcmp.eq.s32.totalorder %v444, %v595
        %vm644 = vcmp.eq.s32.totalorder %v442, %v598
        %vm645 = vcmp.eq.s32.totalorder %v443, %v598
        %vm646 = vcmp.eq.s32.totalorder %v444, %v598
        %vm647 = vcmp.eq.s32.totalorder %v442, %v601
        %vm648 = vcmp.eq.s32.totalorder %v443, %v601
        %vm649 = vcmp.eq.s32.totalorder %v444, %v601
        %vm650 = vcmp.eq.s32.totalorder %v442, %v604
        %vm651 = vcmp.eq.s32.totalorder %v443, %v604
        %vm652 = vcmp.eq.s32.totalorder %v444, %v604
        %vm653 = vmor %vm493, %vm605
        %vm654 = vmor %vm494, %vm606
        %vm655 = vmor %vm495, %vm607
        %vm656 = vmor %vm496, %vm608
        %vm657 = vmor %vm497, %vm609
        %vm658 = vmor %vm498, %vm610
        %vm659 = vmor %vm499, %vm611
        %vm660 = vmor %vm500, %vm612
        %vm661 = vmor %vm501, %vm613
        %vm662 = vmor %vm502, %vm614
        %vm663 = vmor %vm503, %vm615
        %vm664 = vmor %vm504, %vm616
        %vm665 = vmor %vm505, %vm617
        %vm666 = vmor %vm506, %vm618
        %vm667 = vmor %vm507, %vm619
        %vm668 = vmor %vm508, %vm620
        %vm669 = vmor %vm509, %vm621
        %vm670 = vmor %vm510, %vm622
        %vm671 = vmor %vm511, %vm623
        %vm672 = vmor %vm512, %vm624
        %vm673 = vmor %vm513, %vm625
        %vm674 = vmor %vm514, %vm626
        %vm675 = vmor %vm515, %vm627
        %vm676 = vmor %vm516, %vm628
        %vm677 = vmor %vm517, %vm629
        %vm678 = vmor %vm518, %vm630
        %vm679 = vmor %vm519, %vm631
        %vm680 = vmor %vm520, %vm632
        %vm681 = vmor %vm521, %vm633
        %vm682 = vmor %vm522, %vm634
        %vm683 = vmor %vm523, %vm635
        %vm684 = vmor %vm524, %vm636
        %vm685 = vmor %vm525, %vm637
        %vm686 = vmor %vm526, %vm638
        %vm687 = vmor %vm527, %vm639
        %vm688 = vmor %vm528, %vm640
        %vm689 = vmor %vm529, %vm641
        %vm690 = vmor %vm530, %vm642
        %vm691 = vmor %vm531, %vm643
        %vm692 = vmor %vm532, %vm644
        %vm693 = vmor %vm533, %vm645
        %vm694 = vmor %vm534, %vm646
        %vm695 = vmor %vm535, %vm647
        %vm696 = vmor %vm536, %vm648
        %vm697 = vmor %vm537, %vm649
        %vm698 = vmor %vm538, %vm650
        %vm699 = vmor %vm539, %vm651
        %vm700 = vmor %vm540, %vm652
        %v701 = vadd.s32 %v409, 192
        %v702 = vadd.s32 %v410, 192
        %v703 = vadd.s32 %v411, 192
        %v704 = vadd.s32 %v412, 192
        %v705 = vadd.s32 %v413, 192
        %v706 = vadd.s32 %v414, 192
        %v707 = vadd.s32 %v415, 192
        %v708 = vadd.s32 %v416, 192
        %v709 = vadd.s32 %v417, 192
        %v710 = vadd.s32 %v418, 192
        %v711 = vadd.s32 %v419, 192
        %v712 = vadd.s32 %v420, 192
        %v713 = vadd.s32 %v421, 192
        %v714 = vadd.s32 %v422, 192
        %v715 = vadd.s32 %v423, 192
        %v716 = vadd.s32 %v424, 192
        %717 = vset.pattern.permute.xlu0 0
        %718 = vperm.xlu0 %717, %v701
        %v719 = vpop.permute.xlu0 %718
        %720 = vset.pattern.permute.xlu0 0
        %721 = vperm.xlu0 %720, %v702
        %v722 = vpop.permute.xlu0 %721
        %723 = vset.pattern.permute.xlu0 0
        %724 = vperm.xlu0 %723, %v703
        %v725 = vpop.permute.xlu0 %724
        %726 = vset.pattern.permute.xlu0 0
        %727 = vperm.xlu0 %726, %v704
        %v728 = vpop.permute.xlu0 %727
        %729 = vset.pattern.permute.xlu0 0
        %730 = vperm.xlu0 %729, %v705
        %v731 = vpop.permute.xlu0 %730
        %732 = vset.pattern.permute.xlu0 0
        %733 = vperm.xlu0 %732, %v706
        %v734 = vpop.permute.xlu0 %733
        %735 = vset.pattern.permute.xlu0 0
        %736 = vperm.xlu0 %735, %v707
        %v737 = vpop.permute.xlu0 %736
        %738 = vset.pattern.permute.xlu0 0
        %739 = vperm.xlu0 %738, %v708
        %v740 = vpop.permute.xlu0 %739
        %741 = vset.pattern.permute.xlu0 0
        %742 = vperm.xlu0 %741, %v709
        %v743 = vpop.permute.xlu0 %742
        %744 = vset.pattern.permute.xlu0 0
        %745 = vperm.xlu0 %744, %v710
        %v746 = vpop.permute.xlu0 %745
        %747 = vset.pattern.permute.xlu0 0
        %748 = vperm.xlu0 %747, %v711
        %v749 = vpop.permute.xlu0 %748
        %750 = vset.pattern.permute.xlu0 0
        %751 = vperm.xlu0 %750, %v712
        %v752 = vpop.permute.xlu0 %751
        %753 = vset.pattern.permute.xlu0 0
        %754 = vperm.xlu0 %753, %v713
        %v755 = vpop.permute.xlu0 %754
        %756 = vset.pattern.permute.xlu0 0
        %757 = vperm.xlu0 %756, %v714
        %v758 = vpop.permute.xlu0 %757
        %759 = vset.pattern.permute.xlu0 0
        %760 = vperm.xlu0 %759, %v715
        %v761 = vpop.permute.xlu0 %760
        %762 = vset.pattern.permute.xlu0 0
        %763 = vperm.xlu0 %762, %v716
        %v764 = vpop.permute.xlu0 %763
        %vm765 = vcmp.eq.s32.totalorder %v442, %v719
        %vm766 = vcmp.eq.s32.totalorder %v443, %v719
        %vm767 = vcmp.eq.s32.totalorder %v444, %v719
        %vm768 = vcmp.eq.s32.totalorder %v442, %v722
        %vm769 = vcmp.eq.s32.totalorder %v443, %v722
        %vm770 = vcmp.eq.s32.totalorder %v444, %v722
        %vm771 = vcmp.eq.s32.totalorder %v442, %v725
        %vm772 = vcmp.eq.s32.totalorder %v443, %v725
        %vm773 = vcmp.eq.s32.totalorder %v444, %v725
        %vm774 = vcmp.eq.s32.totalorder %v442, %v728
        %vm775 = vcmp.eq.s32.totalorder %v443, %v728
        %vm776 = vcmp.eq.s32.totalorder %v444, %v728
        %vm777 = vcmp.eq.s32.totalorder %v442, %v731
        %vm778 = vcmp.eq.s32.totalorder %v443, %v731
        %vm779 = vcmp.eq.s32.totalorder %v444, %v731
        %vm780 = vcmp.eq.s32.totalorder %v442, %v734
        %vm781 = vcmp.eq.s32.totalorder %v443, %v734
        %vm782 = vcmp.eq.s32.totalorder %v444, %v734
        %vm783 = vcmp.eq.s32.totalorder %v442, %v737
        %vm784 = vcmp.eq.s32.totalorder %v443, %v737
        %vm785 = vcmp.eq.s32.totalorder %v444, %v737
        %vm786 = vcmp.eq.s32.totalorder %v442, %v740
        %vm787 = vcmp.eq.s32.totalorder %v443, %v740
        %vm788 = vcmp.eq.s32.totalorder %v444, %v740
        %vm789 = vcmp.eq.s32.totalorder %v442, %v743
        %vm790 = vcmp.eq.s32.totalorder %v443, %v743
        %vm791 = vcmp.eq.s32.totalorder %v444, %v743
        %vm792 = vcmp.eq.s32.totalorder %v442, %v746
        %vm793 = vcmp.eq.s32.totalorder %v443, %v746
        %vm794 = vcmp.eq.s32.totalorder %v444, %v746
        %vm795 = vcmp.eq.s32.totalorder %v442, %v749
        %vm796 = vcmp.eq.s32.totalorder %v443, %v749
        %vm797 = vcmp.eq.s32.totalorder %v444, %v749
        %vm798 = vcmp.eq.s32.totalorder %v442, %v752
        %vm799 = vcmp.eq.s32.totalorder %v443, %v752
        %vm800 = vcmp.eq.s32.totalorder %v444, %v752
        %vm801 = vcmp.eq.s32.totalorder %v442, %v755
        %vm802 = vcmp.eq.s32.totalorder %v443, %v755
        %vm803 = vcmp.eq.s32.totalorder %v444, %v755
        %vm804 = vcmp.eq.s32.totalorder %v442, %v758
        %vm805 = vcmp.eq.s32.totalorder %v443, %v758
        %vm806 = vcmp.eq.s32.totalorder %v444, %v758
        %vm807 = vcmp.eq.s32.totalorder %v442, %v761
        %vm808 = vcmp.eq.s32.totalorder %v443, %v761
        %vm809 = vcmp.eq.s32.totalorder %v444, %v761
        %vm810 = vcmp.eq.s32.totalorder %v442, %v764
        %vm811 = vcmp.eq.s32.totalorder %v443, %v764
        %vm812 = vcmp.eq.s32.totalorder %v444, %v764
        %vm813 = vmor %vm653, %vm765
        %vm814 = vmor %vm654, %vm766
        %vm815 = vmor %vm655, %vm767
        %vm816 = vmor %vm656, %vm768
        %vm817 = vmor %vm657, %vm769
        %vm818 = vmor %vm658, %vm770
        %vm819 = vmor %vm659, %vm771
        %vm820 = vmor %vm660, %vm772
        %vm821 = vmor %vm661, %vm773
        %vm822 = vmor %vm662, %vm774
        %vm823 = vmor %vm663, %vm775
        %vm824 = vmor %vm664, %vm776
        %vm825 = vmor %vm665, %vm777
        %vm826 = vmor %vm666, %vm778
        %vm827 = vmor %vm667, %vm779
        %vm828 = vmor %vm668, %vm780
        %vm829 = vmor %vm669, %vm781
        %vm830 = vmor %vm670, %vm782
        %vm831 = vmor %vm671, %vm783
        %vm832 = vmor %vm672, %vm784
        %vm833 = vmor %vm673, %vm785
        %vm834 = vmor %vm674, %vm786
        %vm835 = vmor %vm675, %vm787
        %vm836 = vmor %vm676, %vm788
        %vm837 = vmor %vm677, %vm789
        %vm838 = vmor %vm678, %vm790
        %vm839 = vmor %vm679, %vm791
        %vm840 = vmor %vm680, %vm792
        %vm841 = vmor %vm681, %vm793
        %vm842 = vmor %vm682, %vm794
        %vm843 = vmor %vm683, %vm795
        %vm844 = vmor %vm684, %vm796
        %vm845 = vmor %vm685, %vm797
        %vm846 = vmor %vm686, %vm798
        %vm847 = vmor %vm687, %vm799
        %vm848 = vmor %vm688, %vm800
        %vm849 = vmor %vm689, %vm801
        %vm850 = vmor %vm690, %vm802
        %vm851 = vmor %vm691, %vm803
        %vm852 = vmor %vm692, %vm804
        %vm853 = vmor %vm693, %vm805
        %vm854 = vmor %vm694, %vm806
        %vm855 = vmor %vm695, %vm807
        %vm856 = vmor %vm696, %vm808
        %vm857 = vmor %vm697, %vm809
        %vm858 = vmor %vm698, %vm810
        %vm859 = vmor %vm699, %vm811
        %vm860 = vmor %vm700, %vm812
        %v861 = vsel %vm813, 1.0, 0.0
        %v862 = vsel %vm814, 1.0, 0.0
        %v863 = vsel %vm815, 1.0, 0.0
        %v864 = vsel %vm816, 1.0, 0.0
        %v865 = vsel %vm817, 1.0, 0.0
        %v866 = vsel %vm818, 1.0, 0.0
        %v867 = vsel %vm819, 1.0, 0.0
        %v868 = vsel %vm820, 1.0, 0.0
        %v869 = vsel %vm821, 1.0, 0.0
        %v870 = vsel %vm822, 1.0, 0.0
        %v871 = vsel %vm823, 1.0, 0.0
        %v872 = vsel %vm824, 1.0, 0.0
        %v873 = vsel %vm825, 1.0, 0.0
        %v874 = vsel %vm826, 1.0, 0.0
        %v875 = vsel %vm827, 1.0, 0.0
        %v876 = vsel %vm828, 1.0, 0.0
        %v877 = vsel %vm829, 1.0, 0.0
        %v878 = vsel %vm830, 1.0, 0.0
        %v879 = vsel %vm831, 1.0, 0.0
        %v880 = vsel %vm832, 1.0, 0.0
        %v881 = vsel %vm833, 1.0, 0.0
        %v882 = vsel %vm834, 1.0, 0.0
        %v883 = vsel %vm835, 1.0, 0.0
        %v884 = vsel %vm836, 1.0, 0.0
        %v885 = vsel %vm837, 1.0, 0.0
        %v886 = vsel %vm838, 1.0, 0.0
        %v887 = vsel %vm839, 1.0, 0.0
        %v888 = vsel %vm840, 1.0, 0.0
        %v889 = vsel %vm841, 1.0, 0.0
        %v890 = vsel %vm842, 1.0, 0.0
        %v891 = vsel %vm843, 1.0, 0.0
        %v892 = vsel %vm844, 1.0, 0.0
        %v893 = vsel %vm845, 1.0, 0.0
        %v894 = vsel %vm846, 1.0, 0.0
        %v895 = vsel %vm847, 1.0, 0.0
        %v896 = vsel %vm848, 1.0, 0.0
        %v897 = vsel %vm849, 1.0, 0.0
        %v898 = vsel %vm850, 1.0, 0.0
        %v899 = vsel %vm851, 1.0, 0.0
        %v900 = vsel %vm852, 1.0, 0.0
        %v901 = vsel %vm853, 1.0, 0.0
        %v902 = vsel %vm854, 1.0, 0.0
        %v903 = vsel %vm855, 1.0, 0.0
        %v904 = vsel %vm856, 1.0, 0.0
        %v905 = vsel %vm857, 1.0, 0.0
        %v906 = vsel %vm858, 1.0, 0.0
        %v907 = vsel %vm859, 1.0, 0.0
        %v908 = vsel %vm860, 1.0, 0.0
        %v909 = vpack.c.bf16 %v864, %v861
        %v910 = vpack.c.bf16 %v865, %v862
        %v911 = vpack.c.bf16 %v866, %v863
        %v912 = vpack.c.bf16 %v870, %v867
        %v913 = vpack.c.bf16 %v871, %v868
        %v914 = vpack.c.bf16 %v872, %v869
        %v915 = vpack.c.bf16 %v876, %v873
        %v916 = vpack.c.bf16 %v877, %v874
        %v917 = vpack.c.bf16 %v878, %v875
        %v918 = vpack.c.bf16 %v882, %v879
        %v919 = vpack.c.bf16 %v883, %v880
        %v920 = vpack.c.bf16 %v884, %v881
        %v921 = vpack.c.bf16 %v888, %v885
        %v922 = vpack.c.bf16 %v889, %v886
        %v923 = vpack.c.bf16 %v890, %v887
        %v924 = vpack.c.bf16 %v894, %v891
        %v925 = vpack.c.bf16 %v895, %v892
        %v926 = vpack.c.bf16 %v896, %v893
        %v927 = vpack.c.bf16 %v900, %v897
        %v928 = vpack.c.bf16 %v901, %v898
        %v929 = vpack.c.bf16 %v902, %v899
        %v930 = vpack.c.bf16 %v906, %v903
        %v931 = vpack.c.bf16 %v907, %v904
        %v932 = vpack.c.bf16 %v908, %v905
        %v933 = vld [vmem:[%s2] sm:$0xf]
        %v934 = vld [vmem:[%s2 + $0x4] sm:$0xf]
        %v935 = vld [vmem:[%s2 + $0x8] sm:$0xf]
        %v936 = vld [vmem:[%s2 + $0xc] sm:$0xf]
        %v937 = vld [vmem:[%s2 + $0x10] sm:$0xf]
        %v938 = vld [vmem:[%s2 + $0x14] sm:$0xf]
        %v939 = vld [vmem:[%s2 + $0x18] sm:$0xf]
        %v940 = vld [vmem:[%s2 + $0x1c] sm:$0xf]
        %v941 = vld [vmem:[%s2 + $0x20] sm:$0xf]
        %v942 = vld [vmem:[%s2 + $0x24] sm:$0xf]
        %v943 = vld [vmem:[%s2 + $0x28] sm:$0xf]
        %v944 = vld [vmem:[%s2 + $0x2c] sm:$0xf]
        %v945 = vld [vmem:[%s2 + $0x30] sm:$0xf]
        %v946 = vld [vmem:[%s2 + $0x34] sm:$0xf]
        %v947 = vld [vmem:[%s2 + $0x38] sm:$0xf]
        %v948 = vld [vmem:[%s2 + $0x3c] sm:$0xf]
        %v949 = vld [vmem:[%s2 + $0x40] sm:$0xf]
        %v950 = vld [vmem:[%s2 + $0x44] sm:$0xf]
        %v951 = vld [vmem:[%s2 + $0x48] sm:$0xf]
        %v952 = vld [vmem:[%s2 + $0x4c] sm:$0xf]
        %v953 = vld [vmem:[%s2 + $0x50] sm:$0xf]
        %v954 = vld [vmem:[%s2 + $0x54] sm:$0xf]
        %v955 = vld [vmem:[%s2 + $0x58] sm:$0xf]
        %v956 = vld [vmem:[%s2 + $0x5c] sm:$0xf]
        %v957 = vld [vmem:[%s2 + $0x60] sm:$0xf]
        %v958 = vld [vmem:[%s2 + $0x64] sm:$0xf]
        %v959 = vld [vmem:[%s2 + $0x68] sm:$0xf]
        %v960 = vld [vmem:[%s2 + $0x6c] sm:$0xf]
        %v961 = vld [vmem:[%s2 + $0x70] sm:$0xf]
        %v962 = vld [vmem:[%s2 + $0x74] sm:$0xf]
        %v963 = vld [vmem:[%s2 + $0x78] sm:$0xf]
        %v964 = vld [vmem:[%s2 + $0x7c] sm:$0xf]
        %v965 = vld [vmem:[%s2 + $0x80] sm:$0xf]
        %v966 = vld [vmem:[%s2 + $0x84] sm:$0xf]
        %v967 = vld [vmem:[%s2 + $0x88] sm:$0xf]
        %v968 = vld [vmem:[%s2 + $0x8c] sm:$0xf]
        %v1005 = vunpack.c.l.b16 %v933
        %v1006 = vunpack.c.l.b16 %v934
        %v1007 = vunpack.c.l.b16 %v935
        %v1008 = vunpack.c.l.b16 %v936
        %v1009 = vunpack.c.l.b16 %v937
        %v1010 = vunpack.c.l.b16 %v938
        %v1011 = vunpack.c.l.b16 %v939
        %v1012 = vunpack.c.l.b16 %v940
        %v1013 = vunpack.c.l.b16 %v941
        %v1014 = vunpack.c.l.b16 %v942
        %v1015 = vunpack.c.l.b16 %v943
        %v1016 = vunpack.c.l.b16 %v944
        %v1017 = vunpack.c.l.b16 %v945
        %v1018 = vunpack.c.l.b16 %v946
        %v1019 = vunpack.c.l.b16 %v947
        %v1020 = vunpack.c.l.b16 %v948
        %v1021 = vunpack.c.l.b16 %v949
        %v1022 = vunpack.c.l.b16 %v950
        %v1023 = vunpack.c.l.b16 %v951
        %v1024 = vunpack.c.l.b16 %v952
        %v1025 = vunpack.c.l.b16 %v953
        %v1026 = vunpack.c.l.b16 %v954
        %v1027 = vunpack.c.l.b16 %v955
        %v1028 = vunpack.c.l.b16 %v956
        %v1029 = vunpack.c.l.b16 %v957
        %v1030 = vunpack.c.l.b16 %v958
        %v1031 = vunpack.c.l.b16 %v959
        %v1032 = vunpack.c.l.b16 %v960
        %v1033 = vunpack.c.l.b16 %v961
        %v1034 = vunpack.c.l.b16 %v962
        %v1035 = vunpack.c.l.b16 %v963
        %v1036 = vunpack.c.l.b16 %v964
        %v1037 = vunpack.c.l.b16 %v965
        %v1038 = vunpack.c.l.b16 %v966
        %v1039 = vunpack.c.l.b16 %v967
        %v1040 = vunpack.c.l.b16 %v968
        %v1041 = vpack.c.b16 %v1006, %v1005
        %v1042 = vpack.c.b16 %v1008, %v1007
        %v1043 = vpack.c.b16 %v1010, %v1009
        %v1044 = vpack.c.b16 %v1012, %v1011
        %v1045 = vpack.c.b16 %v1014, %v1013
        %v1046 = vpack.c.b16 %v1016, %v1015
        %v1047 = vpack.c.b16 %v1018, %v1017
        %v1048 = vpack.c.b16 %v1020, %v1019
        %v1049 = vpack.c.b16 %v1022, %v1021
        %v1050 = vpack.c.b16 %v1024, %v1023
        %v1051 = vpack.c.b16 %v1026, %v1025
        %v1052 = vpack.c.b16 %v1028, %v1027
        %v1053 = vpack.c.b16 %v1030, %v1029
        %v1054 = vpack.c.b16 %v1032, %v1031
        %v1055 = vpack.c.b16 %v1034, %v1033
        %v1056 = vpack.c.b16 %v1036, %v1035
        %v1057 = vpack.c.b16 %v1038, %v1037
        %v1058 = vpack.c.b16 %v1040, %v1039
        %vm1077 = vcmask 261120
        %v1079 = vsel %vm1077, %v911, 0
        %v1082 = vsel %vm1077, %v914, 0
        %v1085 = vsel %vm1077, %v917, 0
        %v1088 = vsel %vm1077, %v920, 0
        %v1091 = vsel %vm1077, %v923, 0
        %v1094 = vsel %vm1077, %v926, 0
        %v1097 = vsel %vm1077, %v929, 0
        %v1100 = vsel %vm1077, %v932, 0
        %1102 = vmatprep.subr.bf16.mxu0 0
        %1103 = vmatpush1.bf16.msra.mxu0 %v1041
        %1104 = vmatprep.subr.bf16.mxu0 0
        %1105 = vmatpush1.bf16.msra.mxu0 %v1042
        %1106 = vmatprep.subr.bf16.mxu0 0
        %1107 = vmatpush1.bf16.msra.mxu0 %v1043
        %1108 = vmatprep.subr.bf16.mxu0 0
        %1109 = vmatpush1.bf16.msra.mxu0 %v1044
        %1110 = vmatprep.subr.bf16.mxu0 0
        %1111 = vmatpush1.bf16.msra.mxu0 %v1045
        %1112 = vmatprep.subr.bf16.mxu0 0
        %1113 = vmatpush1.bf16.msra.mxu0 %v1046
        %1114 = vmatprep.subr.bf16.mxu0 0
        %1115 = vmatpush1.bf16.msra.mxu0 %v1047
        %1116 = vmatprep.subr.bf16.mxu0 0
        %1117 = vmatpush1.bf16.msra.mxu0 %v1048
        %1118 = vmatprep.subr.bf16.mxu0 0
        %1119 = vmatpush1.bf16.msra.mxu0 %v1049
        %1120 = vmatprep.subr.bf16.mxu0 0
        %1121 = vmatpush1.bf16.msra.mxu0 %v1050
        %1122 = vmatprep.subr.bf16.mxu0 0
        %1123 = vmatpush1.bf16.msra.mxu0 %v1051
        %1124 = vmatprep.subr.bf16.mxu0 0
        %1125 = vmatpush1.bf16.msra.mxu0 %v1052
        %1126 = vmatprep.subr.bf16.mxu0 0
        %1127 = vmatpush1.bf16.msra.mxu0 %v1053
        %1128 = vmatprep.subr.bf16.mxu0 0
        %1129 = vmatpush1.bf16.msra.mxu0 %v1054
        %1130 = vmatprep.subr.bf16.mxu0 0
        %1131 = vmatpush1.bf16.msra.mxu0 %v1055
        %1132 = vmatprep.subr.bf16.mxu0 0
        %1133 = vmatpush1.bf16.msra.mxu0 %v1056
        %1134 = vmatprep.mubr.bf16.mxu0 %v910
        %1135 = vmatmul.mubr.bf16.gmra.mrb[0].mxu0 %v909
        %v1136 = vpop.f32.mrb[0].mxu0
        %v1137 = vadd.f32 0.0, %v1136
        %v1138 = vpop.f32.mrb[0].mxu0
        %v1139 = vpop.f32.mrb[0].mxu0
        %v1140 = vadd.f32 0.0, %v1139
        %v1141 = vpop.f32.mrb[0].mxu0
        %1142 = vmatprep.mubr.bf16.mxu0 %v913
        %1143 = vmatmul.mubr.bf16.gmra.mrb[0].mxu0 %v912
        %v1144 = vpop.f32.mrb[0].mxu0
        %v1145 = vadd.f32 0.0, %v1144
        %v1146 = vpop.f32.mrb[0].mxu0
        %v1147 = vpop.f32.mrb[0].mxu0
        %v1148 = vadd.f32 0.0, %v1147
        %v1149 = vpop.f32.mrb[0].mxu0
        %1150 = vmatprep.mubr.bf16.mxu0 %v916
        %1151 = vmatmul.mubr.bf16.gmra.mrb[0].mxu0 %v915
        %v1152 = vpop.f32.mrb[0].mxu0
        %v1153 = vadd.f32 0.0, %v1152
        %v1154 = vpop.f32.mrb[0].mxu0
        %v1155 = vpop.f32.mrb[0].mxu0
        %v1156 = vadd.f32 0.0, %v1155
        %v1157 = vpop.f32.mrb[0].mxu0
        %1158 = vmatprep.mubr.bf16.mxu0 %v919
        %1159 = vmatmul.mubr.bf16.gmra.mrb[0].mxu0 %v918
        %v1160 = vpop.f32.mrb[0].mxu0
        %v1161 = vadd.f32 0.0, %v1160
        %v1162 = vpop.f32.mrb[0].mxu0
        %v1163 = vpop.f32.mrb[0].mxu0
        %v1164 = vadd.f32 0.0, %v1163
        %v1165 = vpop.f32.mrb[0].mxu0
        %1166 = vmatprep.mubr.bf16.mxu0 %v922
        %1167 = vmatmul.mubr.bf16.gmra.mrb[0].mxu0 %v921
        %v1168 = vpop.f32.mrb[0].mxu0
        %v1169 = vadd.f32 0.0, %v1168
        %v1170 = vpop.f32.mrb[0].mxu0
        %v1171 = vpop.f32.mrb[0].mxu0
        %v1172 = vadd.f32 0.0, %v1171
        %v1173 = vpop.f32.mrb[0].mxu0
        %1174 = vmatprep.mubr.bf16.mxu0 %v925
        %1175 = vmatmul.mubr.bf16.gmra.mrb[0].mxu0 %v924
        %v1176 = vpop.f32.mrb[0].mxu0
        %v1177 = vadd.f32 0.0, %v1176
        %v1178 = vpop.f32.mrb[0].mxu0
        %v1179 = vpop.f32.mrb[0].mxu0
        %v1180 = vadd.f32 0.0, %v1179
        %v1181 = vpop.f32.mrb[0].mxu0
        %1182 = vmatprep.mubr.bf16.mxu0 %v928
        %1183 = vmatmul.mubr.bf16.gmra.mrb[0].mxu0 %v927
        %v1184 = vpop.f32.mrb[0].mxu0
        %v1185 = vadd.f32 0.0, %v1184
        %v1186 = vpop.f32.mrb[0].mxu0
        %v1187 = vpop.f32.mrb[0].mxu0
        %v1188 = vadd.f32 0.0, %v1187
        %v1189 = vpop.f32.mrb[0].mxu0
        %1190 = vmatprep.mubr.bf16.mxu0 %v931
        %1191 = vmatmul.mubr.bf16.gmra.mrb[0].mxu0 %v930
        %v1192 = vpop.f32.mrb[0].mxu0
        %v1193 = vadd.f32 0.0, %v1192
        %v1194 = vpop.f32.mrb[0].mxu0
        %v1195 = vpop.f32.mrb[0].mxu0
        %v1196 = vadd.f32 0.0, %v1195
        %v1197 = vpop.f32.mrb[0].mxu0
        %1198 = vdwg.mxu0
        %1199 = vmatprep.subr.bf16.mxu0 0
        %1200 = vmatpush1.bf16.msra.mxu0 %v1057
        %1201 = vmatprep.subr.bf16.mxu0 0
        %1202 = vmatpush1.bf16.msra.mxu0 %v1058
        %1203 = vmatprep.subr.bf16.mxu0 0
        %1204 = vmatpush1.bf16.msra.mxu0 0
        %1205 = vmatprep.subr.bf16.mxu0 0
        %1206 = vmatpush1.bf16.msra.mxu0 0
        %1207 = vmatprep.subr.bf16.mxu0 0
        %1208 = vmatpush1.bf16.msra.mxu0 0
        %1209 = vmatprep.subr.bf16.mxu0 0
        %1210 = vmatpush1.bf16.msra.mxu0 0
        %1211 = vmatprep.subr.bf16.mxu0 0
        %1212 = vmatpush1.bf16.msra.mxu0 0
        %1213 = vmatprep.subr.bf16.mxu0 0
        %1214 = vmatpush1.bf16.msra.mxu0 0
        %1215 = vmatprep.subr.bf16.mxu0 0
        %1216 = vmatpush1.bf16.msra.mxu0 0
        %1217 = vmatprep.subr.bf16.mxu0 0
        %1218 = vmatpush1.bf16.msra.mxu0 0
        %1219 = vmatprep.subr.bf16.mxu0 0
        %1220 = vmatpush1.bf16.msra.mxu0 0
        %1221 = vmatprep.subr.bf16.mxu0 0
        %1222 = vmatpush1.bf16.msra.mxu0 0
        %1223 = vmatprep.subr.bf16.mxu0 0
        %1224 = vmatpush1.bf16.msra.mxu0 0
        %1225 = vmatprep.subr.bf16.mxu0 0
        %1226 = vmatpush1.bf16.msra.mxu0 0
        %1227 = vmatprep.subr.bf16.mxu0 0
        %1228 = vmatpush1.bf16.msra.mxu0 0
        %1229 = vmatprep.subr.bf16.mxu0 0
        %1230 = vmatpush1.bf16.msra.mxu0 0
        %1231 = vmatprep.mubr.bf16.mxu0 0
        %1232 = vmatmul.mubr.bf16.gmra.mrb[0].mxu0 %v1079
        %v1233 = vpop.f32.mrb[0].mxu0
        %v1234 = vadd.f32 %v1137, %v1233
        %v1235 = vpop.f32.mrb[0].mxu0
        %v1236 = vpop.f32.mrb[0].mxu0
        %v1237 = vadd.f32 %v1140, %v1236
        %v1238 = vpop.f32.mrb[0].mxu0
        %1239 = vmatprep.mubr.bf16.mxu0 0
        %1240 = vmatmul.mubr.bf16.gmra.mrb[0].mxu0 %v1082
        %v1241 = vpop.f32.mrb[0].mxu0
        %v1242 = vadd.f32 %v1145, %v1241
        %v1243 = vpop.f32.mrb[0].mxu0
        %v1244 = vpop.f32.mrb[0].mxu0
        %v1245 = vadd.f32 %v1148, %v1244
        %v1246 = vpop.f32.mrb[0].mxu0
        %1247 = vmatprep.mubr.bf16.mxu0 0
        %1248 = vmatmul.mubr.bf16.gmra.mrb[0].mxu0 %v1085
        %v1249 = vpop.f32.mrb[0].mxu0
        %v1250 = vadd.f32 %v1153, %v1249
        %v1251 = vpop.f32.mrb[0].mxu0
        %v1252 = vpop.f32.mrb[0].mxu0
        %v1253 = vadd.f32 %v1156, %v1252
        %v1254 = vpop.f32.mrb[0].mxu0
        %1255 = vmatprep.mubr.bf16.mxu0 0
        %1256 = vmatmul.mubr.bf16.gmra.mrb[0].mxu0 %v1088
        %v1257 = vpop.f32.mrb[0].mxu0
        %v1258 = vadd.f32 %v1161, %v1257
        %v1259 = vpop.f32.mrb[0].mxu0
        %v1260 = vpop.f32.mrb[0].mxu0
        %v1261 = vadd.f32 %v1164, %v1260
        %v1262 = vpop.f32.mrb[0].mxu0
        %1263 = vmatprep.mubr.bf16.mxu0 0
        %1264 = vmatmul.mubr.bf16.gmra.mrb[0].mxu0 %v1091
        %v1265 = vpop.f32.mrb[0].mxu0
        %v1266 = vadd.f32 %v1169, %v1265
        %v1267 = vpop.f32.mrb[0].mxu0
        %v1268 = vpop.f32.mrb[0].mxu0
        %v1269 = vadd.f32 %v1172, %v1268
        %v1270 = vpop.f32.mrb[0].mxu0
        %1271 = vmatprep.mubr.bf16.mxu0 0
        %1272 = vmatmul.mubr.bf16.gmra.mrb[0].mxu0 %v1094
        %v1273 = vpop.f32.mrb[0].mxu0
        %v1274 = vadd.f32 %v1177, %v1273
        %v1275 = vpop.f32.mrb[0].mxu0
        %v1276 = vpop.f32.mrb[0].mxu0
        %v1277 = vadd.f32 %v1180, %v1276
        %v1278 = vpop.f32.mrb[0].mxu0
        %1279 = vmatprep.mubr.bf16.mxu0 0
        %1280 = vmatmul.mubr.bf16.gmra.mrb[0].mxu0 %v1097
        %v1281 = vpop.f32.mrb[0].mxu0
        %v1282 = vadd.f32 %v1185, %v1281
        %v1283 = vpop.f32.mrb[0].mxu0
        %v1284 = vpop.f32.mrb[0].mxu0
        %v1285 = vadd.f32 %v1188, %v1284
        %v1286 = vpop.f32.mrb[0].mxu0
        %1287 = vmatprep.mubr.bf16.mxu0 0
        %1288 = vmatmul.mubr.bf16.gmra.mrb[0].mxu0 %v1100
        %v1289 = vpop.f32.mrb[0].mxu0
        %v1290 = vadd.f32 %v1193, %v1289
        %v1291 = vpop.f32.mrb[0].mxu0
        %v1292 = vpop.f32.mrb[0].mxu0
        %v1293 = vadd.f32 %v1196, %v1292
        %v1294 = vpop.f32.mrb[0].mxu0
        %1295 = vdwg.mxu0
        %v1296 = vadd.s32 %v442, 384
        %1297 = vset.pattern.permute.xlu0 0
        %1298 = vperm.xlu0 %1297, %v425
        %v1299 = vpop.permute.xlu0 %1298
        %1300 = vset.pattern.permute.xlu0 0
        %1301 = vperm.xlu0 %1300, %v426
        %v1302 = vpop.permute.xlu0 %1301
        %1303 = vset.pattern.permute.xlu0 0
        %1304 = vperm.xlu0 %1303, %v427
        %v1305 = vpop.permute.xlu0 %1304
        %1306 = vset.pattern.permute.xlu0 0
        %1307 = vperm.xlu0 %1306, %v428
        %v1308 = vpop.permute.xlu0 %1307
        %1309 = vset.pattern.permute.xlu0 0
        %1310 = vperm.xlu0 %1309, %v429
        %v1311 = vpop.permute.xlu0 %1310
        %1312 = vset.pattern.permute.xlu0 0
        %1313 = vperm.xlu0 %1312, %v430
        %v1314 = vpop.permute.xlu0 %1313
        %1315 = vset.pattern.permute.xlu0 0
        %1316 = vperm.xlu0 %1315, %v431
        %v1317 = vpop.permute.xlu0 %1316
        %1318 = vset.pattern.permute.xlu0 0
        %1319 = vperm.xlu0 %1318, %v432
        %v1320 = vpop.permute.xlu0 %1319
        %1321 = vset.pattern.permute.xlu0 0
        %1322 = vperm.xlu0 %1321, %v433
        %v1323 = vpop.permute.xlu0 %1322
        %1324 = vset.pattern.permute.xlu0 0
        %1325 = vperm.xlu0 %1324, %v434
        %v1326 = vpop.permute.xlu0 %1325
        %1327 = vset.pattern.permute.xlu0 0
        %1328 = vperm.xlu0 %1327, %v435
        %v1329 = vpop.permute.xlu0 %1328
        %1330 = vset.pattern.permute.xlu0 0
        %1331 = vperm.xlu0 %1330, %v436
        %v1332 = vpop.permute.xlu0 %1331
        %1333 = vset.pattern.permute.xlu0 0
        %1334 = vperm.xlu0 %1333, %v437
        %v1335 = vpop.permute.xlu0 %1334
        %1336 = vset.pattern.permute.xlu0 0
        %1337 = vperm.xlu0 %1336, %v438
        %v1338 = vpop.permute.xlu0 %1337
        %1339 = vset.pattern.permute.xlu0 0
        %1340 = vperm.xlu0 %1339, %v439
        %v1341 = vpop.permute.xlu0 %1340
        %1342 = vset.pattern.permute.xlu0 0
        %1343 = vperm.xlu0 %1342, %v440
        %v1344 = vpop.permute.xlu0 %1343
        %vm1345 = vcmp.eq.s32.totalorder %v442, %v1299
        %vm1346 = vcmp.eq.s32.totalorder %v443, %v1299
        %vm1347 = vcmp.eq.s32.totalorder %v444, %v1299
        %vm1348 = vcmp.eq.s32.totalorder %v1296, %v1299
        %vm1349 = vcmp.eq.s32.totalorder %v442, %v1302
        %vm1350 = vcmp.eq.s32.totalorder %v443, %v1302
        %vm1351 = vcmp.eq.s32.totalorder %v444, %v1302
        %vm1352 = vcmp.eq.s32.totalorder %v1296, %v1302
        %vm1353 = vcmp.eq.s32.totalorder %v442, %v1305
        %vm1354 = vcmp.eq.s32.totalorder %v443, %v1305
        %vm1355 = vcmp.eq.s32.totalorder %v444, %v1305
        %vm1356 = vcmp.eq.s32.totalorder %v1296, %v1305
        %vm1357 = vcmp.eq.s32.totalorder %v442, %v1308
        %vm1358 = vcmp.eq.s32.totalorder %v443, %v1308
        %vm1359 = vcmp.eq.s32.totalorder %v444, %v1308
        %vm1360 = vcmp.eq.s32.totalorder %v1296, %v1308
        %vm1361 = vcmp.eq.s32.totalorder %v442, %v1311
        %vm1362 = vcmp.eq.s32.totalorder %v443, %v1311
        %vm1363 = vcmp.eq.s32.totalorder %v444, %v1311
        %vm1364 = vcmp.eq.s32.totalorder %v1296, %v1311
        %vm1365 = vcmp.eq.s32.totalorder %v442, %v1314
        %vm1366 = vcmp.eq.s32.totalorder %v443, %v1314
        %vm1367 = vcmp.eq.s32.totalorder %v444, %v1314
        %vm1368 = vcmp.eq.s32.totalorder %v1296, %v1314
        %vm1369 = vcmp.eq.s32.totalorder %v442, %v1317
        %vm1370 = vcmp.eq.s32.totalorder %v443, %v1317
        %vm1371 = vcmp.eq.s32.totalorder %v444, %v1317
        %vm1372 = vcmp.eq.s32.totalorder %v1296, %v1317
        %vm1373 = vcmp.eq.s32.totalorder %v442, %v1320
        %vm1374 = vcmp.eq.s32.totalorder %v443, %v1320
        %vm1375 = vcmp.eq.s32.totalorder %v444, %v1320
        %vm1376 = vcmp.eq.s32.totalorder %v1296, %v1320
        %vm1377 = vcmp.eq.s32.totalorder %v442, %v1323
        %vm1378 = vcmp.eq.s32.totalorder %v443, %v1323
        %vm1379 = vcmp.eq.s32.totalorder %v444, %v1323
        %vm1380 = vcmp.eq.s32.totalorder %v1296, %v1323
        %vm1381 = vcmp.eq.s32.totalorder %v442, %v1326
        %vm1382 = vcmp.eq.s32.totalorder %v443, %v1326
        %vm1383 = vcmp.eq.s32.totalorder %v444, %v1326
        %vm1384 = vcmp.eq.s32.totalorder %v1296, %v1326
        %vm1385 = vcmp.eq.s32.totalorder %v442, %v1329
        %vm1386 = vcmp.eq.s32.totalorder %v443, %v1329
        %vm1387 = vcmp.eq.s32.totalorder %v444, %v1329
        %vm1388 = vcmp.eq.s32.totalorder %v1296, %v1329
        %vm1389 = vcmp.eq.s32.totalorder %v442, %v1332
        %vm1390 = vcmp.eq.s32.totalorder %v443, %v1332
        %vm1391 = vcmp.eq.s32.totalorder %v444, %v1332
        %vm1392 = vcmp.eq.s32.totalorder %v1296, %v1332
        %vm1393 = vcmp.eq.s32.totalorder %v442, %v1335
        %vm1394 = vcmp.eq.s32.totalorder %v443, %v1335
        %vm1395 = vcmp.eq.s32.totalorder %v444, %v1335
        %vm1396 = vcmp.eq.s32.totalorder %v1296, %v1335
        %vm1397 = vcmp.eq.s32.totalorder %v442, %v1338
        %vm1398 = vcmp.eq.s32.totalorder %v443, %v1338
        %vm1399 = vcmp.eq.s32.totalorder %v444, %v1338
        %vm1400 = vcmp.eq.s32.totalorder %v1296, %v1338
        %vm1401 = vcmp.eq.s32.totalorder %v442, %v1341
        %vm1402 = vcmp.eq.s32.totalorder %v443, %v1341
        %vm1403 = vcmp.eq.s32.totalorder %v444, %v1341
        %vm1404 = vcmp.eq.s32.totalorder %v1296, %v1341
        %vm1405 = vcmp.eq.s32.totalorder %v442, %v1344
        %vm1406 = vcmp.eq.s32.totalorder %v443, %v1344
        %vm1407 = vcmp.eq.s32.totalorder %v444, %v1344
        %vm1408 = vcmp.eq.s32.totalorder %v1296, %v1344
        %v1409 = vadd.s32 %v425, 160
        %v1410 = vadd.s32 %v426, 160
        %v1411 = vadd.s32 %v427, 160
        %v1412 = vadd.s32 %v428, 160
        %v1413 = vadd.s32 %v429, 160
        %v1414 = vadd.s32 %v430, 160
        %v1415 = vadd.s32 %v431, 160
        %v1416 = vadd.s32 %v432, 160
        %v1417 = vadd.s32 %v433, 160
        %v1418 = vadd.s32 %v434, 160
        %v1419 = vadd.s32 %v435, 160
        %v1420 = vadd.s32 %v436, 160
        %v1421 = vadd.s32 %v437, 160
        %v1422 = vadd.s32 %v438, 160
        %v1423 = vadd.s32 %v439, 160
        %v1424 = vadd.s32 %v440, 160
        %1425 = vset.pattern.permute.xlu0 0
        %1426 = vperm.xlu0 %1425, %v1409
        %v1427 = vpop.permute.xlu0 %1426
        %1428 = vset.pattern.permute.xlu0 0
        %1429 = vperm.xlu0 %1428, %v1410
        %v1430 = vpop.permute.xlu0 %1429
        %1431 = vset.pattern.permute.xlu0 0
        %1432 = vperm.xlu0 %1431, %v1411
        %v1433 = vpop.permute.xlu0 %1432
        %1434 = vset.pattern.permute.xlu0 0
        %1435 = vperm.xlu0 %1434, %v1412
        %v1436 = vpop.permute.xlu0 %1435
        %1437 = vset.pattern.permute.xlu0 0
        %1438 = vperm.xlu0 %1437, %v1413
        %v1439 = vpop.permute.xlu0 %1438
        %1440 = vset.pattern.permute.xlu0 0
        %1441 = vperm.xlu0 %1440, %v1414
        %v1442 = vpop.permute.xlu0 %1441
        %1443 = vset.pattern.permute.xlu0 0
        %1444 = vperm.xlu0 %1443, %v1415
        %v1445 = vpop.permute.xlu0 %1444
        %1446 = vset.pattern.permute.xlu0 0
        %1447 = vperm.xlu0 %1446, %v1416
        %v1448 = vpop.permute.xlu0 %1447
        %1449 = vset.pattern.permute.xlu0 0
        %1450 = vperm.xlu0 %1449, %v1417
        %v1451 = vpop.permute.xlu0 %1450
        %1452 = vset.pattern.permute.xlu0 0
        %1453 = vperm.xlu0 %1452, %v1418
        %v1454 = vpop.permute.xlu0 %1453
        %1455 = vset.pattern.permute.xlu0 0
        %1456 = vperm.xlu0 %1455, %v1419
        %v1457 = vpop.permute.xlu0 %1456
        %1458 = vset.pattern.permute.xlu0 0
        %1459 = vperm.xlu0 %1458, %v1420
        %v1460 = vpop.permute.xlu0 %1459
        %1461 = vset.pattern.permute.xlu0 0
        %1462 = vperm.xlu0 %1461, %v1421
        %v1463 = vpop.permute.xlu0 %1462
        %1464 = vset.pattern.permute.xlu0 0
        %1465 = vperm.xlu0 %1464, %v1422
        %v1466 = vpop.permute.xlu0 %1465
        %1467 = vset.pattern.permute.xlu0 0
        %1468 = vperm.xlu0 %1467, %v1423
        %v1469 = vpop.permute.xlu0 %1468
        %1470 = vset.pattern.permute.xlu0 0
        %1471 = vperm.xlu0 %1470, %v1424
        %v1472 = vpop.permute.xlu0 %1471
        %vm1473 = vcmp.eq.s32.totalorder %v442, %v1427
        %vm1474 = vcmp.eq.s32.totalorder %v443, %v1427
        %vm1475 = vcmp.eq.s32.totalorder %v444, %v1427
        %vm1476 = vcmp.eq.s32.totalorder %v1296, %v1427
        %vm1477 = vcmp.eq.s32.totalorder %v442, %v1430
        %vm1478 = vcmp.eq.s32.totalorder %v443, %v1430
        %vm1479 = vcmp.eq.s32.totalorder %v444, %v1430
        %vm1480 = vcmp.eq.s32.totalorder %v1296, %v1430
        %vm1481 = vcmp.eq.s32.totalorder %v442, %v1433
        %vm1482 = vcmp.eq.s32.totalorder %v443, %v1433
        %vm1483 = vcmp.eq.s32.totalorder %v444, %v1433
        %vm1484 = vcmp.eq.s32.totalorder %v1296, %v1433
        %vm1485 = vcmp.eq.s32.totalorder %v442, %v1436
        %vm1486 = vcmp.eq.s32.totalorder %v443, %v1436
        %vm1487 = vcmp.eq.s32.totalorder %v444, %v1436
        %vm1488 = vcmp.eq.s32.totalorder %v1296, %v1436
        %vm1489 = vcmp.eq.s32.totalorder %v442, %v1439
        %vm1490 = vcmp.eq.s32.totalorder %v443, %v1439
        %vm1491 = vcmp.eq.s32.totalorder %v444, %v1439
        %vm1492 = vcmp.eq.s32.totalorder %v1296, %v1439
        %vm1493 = vcmp.eq.s32.totalorder %v442, %v1442
        %vm1494 = vcmp.eq.s32.totalorder %v443, %v1442
        %vm1495 = vcmp.eq.s32.totalorder %v444, %v1442
        %vm1496 = vcmp.eq.s32.totalorder %v1296, %v1442
        %vm1497 = vcmp.eq.s32.totalorder %v442, %v1445
        %vm1498 = vcmp.eq.s32.totalorder %v443, %v1445
        %vm1499 = vcmp.eq.s32.totalorder %v444, %v1445
        %vm1500 = vcmp.eq.s32.totalorder %v1296, %v1445
        %vm1501 = vcmp.eq.s32.totalorder %v442, %v1448
        %vm1502 = vcmp.eq.s32.totalorder %v443, %v1448
        %vm1503 = vcmp.eq.s32.totalorder %v444, %v1448
        %vm1504 = vcmp.eq.s32.totalorder %v1296, %v1448
        %vm1505 = vcmp.eq.s32.totalorder %v442, %v1451
        %vm1506 = vcmp.eq.s32.totalorder %v443, %v1451
        %vm1507 = vcmp.eq.s32.totalorder %v444, %v1451
        %vm1508 = vcmp.eq.s32.totalorder %v1296, %v1451
        %vm1509 = vcmp.eq.s32.totalorder %v442, %v1454
        %vm1510 = vcmp.eq.s32.totalorder %v443, %v1454
        %vm1511 = vcmp.eq.s32.totalorder %v444, %v1454
        %vm1512 = vcmp.eq.s32.totalorder %v1296, %v1454
        %vm1513 = vcmp.eq.s32.totalorder %v442, %v1457
        %vm1514 = vcmp.eq.s32.totalorder %v443, %v1457
        %vm1515 = vcmp.eq.s32.totalorder %v444, %v1457
        %vm1516 = vcmp.eq.s32.totalorder %v1296, %v1457
        %vm1517 = vcmp.eq.s32.totalorder %v442, %v1460
        %vm1518 = vcmp.eq.s32.totalorder %v443, %v1460
        %vm1519 = vcmp.eq.s32.totalorder %v444, %v1460
        %vm1520 = vcmp.eq.s32.totalorder %v1296, %v1460
        %vm1521 = vcmp.eq.s32.totalorder %v442, %v1463
        %vm1522 = vcmp.eq.s32.totalorder %v443, %v1463
        %vm1523 = vcmp.eq.s32.totalorder %v444, %v1463
        %vm1524 = vcmp.eq.s32.totalorder %v1296, %v1463
        %vm1525 = vcmp.eq.s32.totalorder %v442, %v1466
        %vm1526 = vcmp.eq.s32.totalorder %v443, %v1466
        %vm1527 = vcmp.eq.s32.totalorder %v444, %v1466
        %vm1528 = vcmp.eq.s32.totalorder %v1296, %v1466
        %vm1529 = vcmp.eq.s32.totalorder %v442, %v1469
        %vm1530 = vcmp.eq.s32.totalorder %v443, %v1469
        %vm1531 = vcmp.eq.s32.totalorder %v444, %v1469
        %vm1532 = vcmp.eq.s32.totalorder %v1296, %v1469
        %vm1533 = vcmp.eq.s32.totalorder %v442, %v1472
        %vm1534 = vcmp.eq.s32.totalorder %v443, %v1472
        %vm1535 = vcmp.eq.s32.totalorder %v444, %v1472
        %vm1536 = vcmp.eq.s32.totalorder %v1296, %v1472
        %vm1537 = vmor %vm1345, %vm1473
        %vm1538 = vmor %vm1346, %vm1474
        %vm1539 = vmor %vm1347, %vm1475
        %vm1540 = vmor %vm1348, %vm1476
        %vm1541 = vmor %vm1349, %vm1477
        %vm1542 = vmor %vm1350, %vm1478
        %vm1543 = vmor %vm1351, %vm1479
        %vm1544 = vmor %vm1352, %vm1480
        %vm1545 = vmor %vm1353, %vm1481
        %vm1546 = vmor %vm1354, %vm1482
        %vm1547 = vmor %vm1355, %vm1483
        %vm1548 = vmor %vm1356, %vm1484
        %vm1549 = vmor %vm1357, %vm1485
        %vm1550 = vmor %vm1358, %vm1486
        %vm1551 = vmor %vm1359, %vm1487
        %vm1552 = vmor %vm1360, %vm1488
        %vm1553 = vmor %vm1361, %vm1489
        %vm1554 = vmor %vm1362, %vm1490
        %vm1555 = vmor %vm1363, %vm1491
        %vm1556 = vmor %vm1364, %vm1492
        %vm1557 = vmor %vm1365, %vm1493
        %vm1558 = vmor %vm1366, %vm1494
        %vm1559 = vmor %vm1367, %vm1495
        %vm1560 = vmor %vm1368, %vm1496
        %vm1561 = vmor %vm1369, %vm1497
        %vm1562 = vmor %vm1370, %vm1498
        %vm1563 = vmor %vm1371, %vm1499
        %vm1564 = vmor %vm1372, %vm1500
        %vm1565 = vmor %vm1373, %vm1501
        %vm1566 = vmor %vm1374, %vm1502
        %vm1567 = vmor %vm1375, %vm1503
        %vm1568 = vmor %vm1376, %vm1504
        %vm1569 = vmor %vm1377, %vm1505
        %vm1570 = vmor %vm1378, %vm1506
        %vm1571 = vmor %vm1379, %vm1507
        %vm1572 = vmor %vm1380, %vm1508
        %vm1573 = vmor %vm1381, %vm1509
        %vm1574 = vmor %vm1382, %vm1510
        %vm1575 = vmor %vm1383, %vm1511
        %vm1576 = vmor %vm1384, %vm1512
        %vm1577 = vmor %vm1385, %vm1513
        %vm1578 = vmor %vm1386, %vm1514
        %vm1579 = vmor %vm1387, %vm1515
        %vm1580 = vmor %vm1388, %vm1516
        %vm1581 = vmor %vm1389, %vm1517
        %vm1582 = vmor %vm1390, %vm1518
        %vm1583 = vmor %vm1391, %vm1519
        %vm1584 = vmor %vm1392, %vm1520
        %vm1585 = vmor %vm1393, %vm1521
        %vm1586 = vmor %vm1394, %vm1522
        %vm1587 = vmor %vm1395, %vm1523
        %vm1588 = vmor %vm1396, %vm1524
        %vm1589 = vmor %vm1397, %vm1525
        %vm1590 = vmor %vm1398, %vm1526
        %vm1591 = vmor %vm1399, %vm1527
        %vm1592 = vmor %vm1400, %vm1528
        %vm1593 = vmor %vm1401, %vm1529
        %vm1594 = vmor %vm1402, %vm1530
        %vm1595 = vmor %vm1403, %vm1531
        %vm1596 = vmor %vm1404, %vm1532
        %vm1597 = vmor %vm1405, %vm1533
        %vm1598 = vmor %vm1406, %vm1534
        %vm1599 = vmor %vm1407, %vm1535
        %vm1600 = vmor %vm1408, %vm1536
        %v1601 = vadd.s32 %v425, 320
        %v1602 = vadd.s32 %v426, 320
        %v1603 = vadd.s32 %v427, 320
        %v1604 = vadd.s32 %v428, 320
        %v1605 = vadd.s32 %v429, 320
        %v1606 = vadd.s32 %v430, 320
        %v1607 = vadd.s32 %v431, 320
        %v1608 = vadd.s32 %v432, 320
        %v1609 = vadd.s32 %v433, 320
        %v1610 = vadd.s32 %v434, 320
        %v1611 = vadd.s32 %v435, 320
        %v1612 = vadd.s32 %v436, 320
        %v1613 = vadd.s32 %v437, 320
        %v1614 = vadd.s32 %v438, 320
        %v1615 = vadd.s32 %v439, 320
        %v1616 = vadd.s32 %v440, 320
        %1617 = vset.pattern.permute.xlu0 0
        %1618 = vperm.xlu0 %1617, %v1601
        %v1619 = vpop.permute.xlu0 %1618
        %1620 = vset.pattern.permute.xlu0 0
        %1621 = vperm.xlu0 %1620, %v1602
        %v1622 = vpop.permute.xlu0 %1621
        %1623 = vset.pattern.permute.xlu0 0
        %1624 = vperm.xlu0 %1623, %v1603
        %v1625 = vpop.permute.xlu0 %1624
        %1626 = vset.pattern.permute.xlu0 0
        %1627 = vperm.xlu0 %1626, %v1604
        %v1628 = vpop.permute.xlu0 %1627
        %1629 = vset.pattern.permute.xlu0 0
        %1630 = vperm.xlu0 %1629, %v1605
        %v1631 = vpop.permute.xlu0 %1630
        %1632 = vset.pattern.permute.xlu0 0
        %1633 = vperm.xlu0 %1632, %v1606
        %v1634 = vpop.permute.xlu0 %1633
        %1635 = vset.pattern.permute.xlu0 0
        %1636 = vperm.xlu0 %1635, %v1607
        %v1637 = vpop.permute.xlu0 %1636
        %1638 = vset.pattern.permute.xlu0 0
        %1639 = vperm.xlu0 %1638, %v1608
        %v1640 = vpop.permute.xlu0 %1639
        %1641 = vset.pattern.permute.xlu0 0
        %1642 = vperm.xlu0 %1641, %v1609
        %v1643 = vpop.permute.xlu0 %1642
        %1644 = vset.pattern.permute.xlu0 0
        %1645 = vperm.xlu0 %1644, %v1610
        %v1646 = vpop.permute.xlu0 %1645
        %1647 = vset.pattern.permute.xlu0 0
        %1648 = vperm.xlu0 %1647, %v1611
        %v1649 = vpop.permute.xlu0 %1648
        %1650 = vset.pattern.permute.xlu0 0
        %1651 = vperm.xlu0 %1650, %v1612
        %v1652 = vpop.permute.xlu0 %1651
        %1653 = vset.pattern.permute.xlu0 0
        %1654 = vperm.xlu0 %1653, %v1613
        %v1655 = vpop.permute.xlu0 %1654
        %1656 = vset.pattern.permute.xlu0 0
        %1657 = vperm.xlu0 %1656, %v1614
        %v1658 = vpop.permute.xlu0 %1657
        %1659 = vset.pattern.permute.xlu0 0
        %1660 = vperm.xlu0 %1659, %v1615
        %v1661 = vpop.permute.xlu0 %1660
        %1662 = vset.pattern.permute.xlu0 0
        %1663 = vperm.xlu0 %1662, %v1616
        %v1664 = vpop.permute.xlu0 %1663
        %vm1665 = vcmp.eq.s32.totalorder %v442, %v1619
        %vm1666 = vcmp.eq.s32.totalorder %v443, %v1619
        %vm1667 = vcmp.eq.s32.totalorder %v444, %v1619
        %vm1668 = vcmp.eq.s32.totalorder %v1296, %v1619
        %vm1669 = vcmp.eq.s32.totalorder %v442, %v1622
        %vm1670 = vcmp.eq.s32.totalorder %v443, %v1622
        %vm1671 = vcmp.eq.s32.totalorder %v444, %v1622
        %vm1672 = vcmp.eq.s32.totalorder %v1296, %v1622
        %vm1673 = vcmp.eq.s32.totalorder %v442, %v1625
        %vm1674 = vcmp.eq.s32.totalorder %v443, %v1625
        %vm1675 = vcmp.eq.s32.totalorder %v444, %v1625
        %vm1676 = vcmp.eq.s32.totalorder %v1296, %v1625
        %vm1677 = vcmp.eq.s32.totalorder %v442, %v1628
        %vm1678 = vcmp.eq.s32.totalorder %v443, %v1628
        %vm1679 = vcmp.eq.s32.totalorder %v444, %v1628
        %vm1680 = vcmp.eq.s32.totalorder %v1296, %v1628
        %vm1681 = vcmp.eq.s32.totalorder %v442, %v1631
        %vm1682 = vcmp.eq.s32.totalorder %v443, %v1631
        %vm1683 = vcmp.eq.s32.totalorder %v444, %v1631
        %vm1684 = vcmp.eq.s32.totalorder %v1296, %v1631
        %vm1685 = vcmp.eq.s32.totalorder %v442, %v1634
        %vm1686 = vcmp.eq.s32.totalorder %v443, %v1634
        %vm1687 = vcmp.eq.s32.totalorder %v444, %v1634
        %vm1688 = vcmp.eq.s32.totalorder %v1296, %v1634
        %vm1689 = vcmp.eq.s32.totalorder %v442, %v1637
        %vm1690 = vcmp.eq.s32.totalorder %v443, %v1637
        %vm1691 = vcmp.eq.s32.totalorder %v444, %v1637
        %vm1692 = vcmp.eq.s32.totalorder %v1296, %v1637
        %vm1693 = vcmp.eq.s32.totalorder %v442, %v1640
        %vm1694 = vcmp.eq.s32.totalorder %v443, %v1640
        %vm1695 = vcmp.eq.s32.totalorder %v444, %v1640
        %vm1696 = vcmp.eq.s32.totalorder %v1296, %v1640
        %vm1697 = vcmp.eq.s32.totalorder %v442, %v1643
        %vm1698 = vcmp.eq.s32.totalorder %v443, %v1643
        %vm1699 = vcmp.eq.s32.totalorder %v444, %v1643
        %vm1700 = vcmp.eq.s32.totalorder %v1296, %v1643
        %vm1701 = vcmp.eq.s32.totalorder %v442, %v1646
        %vm1702 = vcmp.eq.s32.totalorder %v443, %v1646
        %vm1703 = vcmp.eq.s32.totalorder %v444, %v1646
        %vm1704 = vcmp.eq.s32.totalorder %v1296, %v1646
        %vm1705 = vcmp.eq.s32.totalorder %v442, %v1649
        %vm1706 = vcmp.eq.s32.totalorder %v443, %v1649
        %vm1707 = vcmp.eq.s32.totalorder %v444, %v1649
        %vm1708 = vcmp.eq.s32.totalorder %v1296, %v1649
        %vm1709 = vcmp.eq.s32.totalorder %v442, %v1652
        %vm1710 = vcmp.eq.s32.totalorder %v443, %v1652
        %vm1711 = vcmp.eq.s32.totalorder %v444, %v1652
        %vm1712 = vcmp.eq.s32.totalorder %v1296, %v1652
        %vm1713 = vcmp.eq.s32.totalorder %v442, %v1655
        %vm1714 = vcmp.eq.s32.totalorder %v443, %v1655
        %vm1715 = vcmp.eq.s32.totalorder %v444, %v1655
        %vm1716 = vcmp.eq.s32.totalorder %v1296, %v1655
        %vm1717 = vcmp.eq.s32.totalorder %v442, %v1658
        %vm1718 = vcmp.eq.s32.totalorder %v443, %v1658
        %vm1719 = vcmp.eq.s32.totalorder %v444, %v1658
        %vm1720 = vcmp.eq.s32.totalorder %v1296, %v1658
        %vm1721 = vcmp.eq.s32.totalorder %v442, %v1661
        %vm1722 = vcmp.eq.s32.totalorder %v443, %v1661
        %vm1723 = vcmp.eq.s32.totalorder %v444, %v1661
        %vm1724 = vcmp.eq.s32.totalorder %v1296, %v1661
        %vm1725 = vcmp.eq.s32.totalorder %v442, %v1664
        %vm1726 = vcmp.eq.s32.totalorder %v443, %v1664
        %vm1727 = vcmp.eq.s32.totalorder %v444, %v1664
        %vm1728 = vcmp.eq.s32.totalorder %v1296, %v1664
        %vm1729 = vmor %vm1537, %vm1665
        %vm1730 = vmor %vm1538, %vm1666
        %vm1731 = vmor %vm1539, %vm1667
        %vm1732 = vmor %vm1540, %vm1668
        %vm1733 = vmor %vm1541, %vm1669
        %vm1734 = vmor %vm1542, %vm1670
        %vm1735 = vmor %vm1543, %vm1671
        %vm1736 = vmor %vm1544, %vm1672
        %vm1737 = vmor %vm1545, %vm1673
        %vm1738 = vmor %vm1546, %vm1674
        %vm1739 = vmor %vm1547, %vm1675
        %vm1740 = vmor %vm1548, %vm1676
        %vm1741 = vmor %vm1549, %vm1677
        %vm1742 = vmor %vm1550, %vm1678
        %vm1743 = vmor %vm1551, %vm1679
        %vm1744 = vmor %vm1552, %vm1680
        %vm1745 = vmor %vm1553, %vm1681
        %vm1746 = vmor %vm1554, %vm1682
        %vm1747 = vmor %vm1555, %vm1683
        %vm1748 = vmor %vm1556, %vm1684
        %vm1749 = vmor %vm1557, %vm1685
        %vm1750 = vmor %vm1558, %vm1686
        %vm1751 = vmor %vm1559, %vm1687
        %vm1752 = vmor %vm1560, %vm1688
        %vm1753 = vmor %vm1561, %vm1689
        %vm1754 = vmor %vm1562, %vm1690
        %vm1755 = vmor %vm1563, %vm1691
        %vm1756 = vmor %vm1564, %vm1692
        %vm1757 = vmor %vm1565, %vm1693
        %vm1758 = vmor %vm1566, %vm1694
        %vm1759 = vmor %vm1567, %vm1695
        %vm1760 = vmor %vm1568, %vm1696
        %vm1761 = vmor %vm1569, %vm1697
        %vm1762 = vmor %vm1570, %vm1698
        %vm1763 = vmor %vm1571, %vm1699
        %vm1764 = vmor %vm1572, %vm1700
        %vm1765 = vmor %vm1573, %vm1701
        %vm1766 = vmor %vm1574, %vm1702
        %vm1767 = vmor %vm1575, %vm1703
        %vm1768 = vmor %vm1576, %vm1704
        %vm1769 = vmor %vm1577, %vm1705
        %vm1770 = vmor %vm1578, %vm1706
        %vm1771 = vmor %vm1579, %vm1707
        %vm1772 = vmor %vm1580, %vm1708
        %vm1773 = vmor %vm1581, %vm1709
        %vm1774 = vmor %vm1582, %vm1710
        %vm1775 = vmor %vm1583, %vm1711
        %vm1776 = vmor %vm1584, %vm1712
        %vm1777 = vmor %vm1585, %vm1713
        %vm1778 = vmor %vm1586, %vm1714
        %vm1779 = vmor %vm1587, %vm1715
        %vm1780 = vmor %vm1588, %vm1716
        %vm1781 = vmor %vm1589, %vm1717
        %vm1782 = vmor %vm1590, %vm1718
        %vm1783 = vmor %vm1591, %vm1719
        %vm1784 = vmor %vm1592, %vm1720
        %vm1785 = vmor %vm1593, %vm1721
        %vm1786 = vmor %vm1594, %vm1722
        %vm1787 = vmor %vm1595, %vm1723
        %vm1788 = vmor %vm1596, %vm1724
        %vm1789 = vmor %vm1597, %vm1725
        %vm1790 = vmor %vm1598, %vm1726
        %vm1791 = vmor %vm1599, %vm1727
        %vm1792 = vmor %vm1600, %vm1728
        %v1793 = vsel %vm1729, 1.0, 0.0
        %v1794 = vsel %vm1730, 1.0, 0.0
        %v1795 = vsel %vm1731, 1.0, 0.0
        %v1796 = vsel %vm1732, 1.0, 0.0
        %v1797 = vsel %vm1733, 1.0, 0.0
        %v1798 = vsel %vm1734, 1.0, 0.0
        %v1799 = vsel %vm1735, 1.0, 0.0
        %v1800 = vsel %vm1736, 1.0, 0.0
        %v1801 = vsel %vm1737, 1.0, 0.0
        %v1802 = vsel %vm1738, 1.0, 0.0
        %v1803 = vsel %vm1739, 1.0, 0.0
        %v1804 = vsel %vm1740, 1.0, 0.0
        %v1805 = vsel %vm1741, 1.0, 0.0
        %v1806 = vsel %vm1742, 1.0, 0.0
        %v1807 = vsel %vm1743, 1.0, 0.0
        %v1808 = vsel %vm1744, 1.0, 0.0
        %v1809 = vsel %vm1745, 1.0, 0.0
        %v1810 = vsel %vm1746, 1.0, 0.0
        %v1811 = vsel %vm1747, 1.0, 0.0
        %v1812 = vsel %vm1748, 1.0, 0.0
        %v1813 = vsel %vm1749, 1.0, 0.0
        %v1814 = vsel %vm1750, 1.0, 0.0
        %v1815 = vsel %vm1751, 1.0, 0.0
        %v1816 = vsel %vm1752, 1.0, 0.0
        %v1817 = vsel %vm1753, 1.0, 0.0
        %v1818 = vsel %vm1754, 1.0, 0.0
        %v1819 = vsel %vm1755, 1.0, 0.0
        %v1820 = vsel %vm1756, 1.0, 0.0
        %v1821 = vsel %vm1757, 1.0, 0.0
        %v1822 = vsel %vm1758, 1.0, 0.0
        %v1823 = vsel %vm1759, 1.0, 0.0
        %v1824 = vsel %vm1760, 1.0, 0.0
        %v1825 = vsel %vm1761, 1.0, 0.0
        %v1826 = vsel %vm1762, 1.0, 0.0
        %v1827 = vsel %vm1763, 1.0, 0.0
        %v1828 = vsel %vm1764, 1.0, 0.0
        %v1829 = vsel %vm1765, 1.0, 0.0
        %v1830 = vsel %vm1766, 1.0, 0.0
        %v1831 = vsel %vm1767, 1.0, 0.0
        %v1832 = vsel %vm1768, 1.0, 0.0
        %v1833 = vsel %vm1769, 1.0, 0.0
        %v1834 = vsel %vm1770, 1.0, 0.0
        %v1835 = vsel %vm1771, 1.0, 0.0
        %v1836 = vsel %vm1772, 1.0, 0.0
        %v1837 = vsel %vm1773, 1.0, 0.0
        %v1838 = vsel %vm1774, 1.0, 0.0
        %v1839 = vsel %vm1775, 1.0, 0.0
        %v1840 = vsel %vm1776, 1.0, 0.0
        %v1841 = vsel %vm1777, 1.0, 0.0
        %v1842 = vsel %vm1778, 1.0, 0.0
        %v1843 = vsel %vm1779, 1.0, 0.0
        %v1844 = vsel %vm1780, 1.0, 0.0
        %v1845 = vsel %vm1781, 1.0, 0.0
        %v1846 = vsel %vm1782, 1.0, 0.0
        %v1847 = vsel %vm1783, 1.0, 0.0
        %v1848 = vsel %vm1784, 1.0, 0.0
        %v1849 = vsel %vm1785, 1.0, 0.0
        %v1850 = vsel %vm1786, 1.0, 0.0
        %v1851 = vsel %vm1787, 1.0, 0.0
        %v1852 = vsel %vm1788, 1.0, 0.0
        %v1853 = vsel %vm1789, 1.0, 0.0
        %v1854 = vsel %vm1790, 1.0, 0.0
        %v1855 = vsel %vm1791, 1.0, 0.0
        %v1856 = vsel %vm1792, 1.0, 0.0
        %v1857 = vpack.c.bf16 %v1797, %v1793
        %v1858 = vpack.c.bf16 %v1798, %v1794
        %v1859 = vpack.c.bf16 %v1799, %v1795
        %v1860 = vpack.c.bf16 %v1800, %v1796
        %v1861 = vpack.c.bf16 %v1805, %v1801
        %v1862 = vpack.c.bf16 %v1806, %v1802
        %v1863 = vpack.c.bf16 %v1807, %v1803
        %v1864 = vpack.c.bf16 %v1808, %v1804
        %v1865 = vpack.c.bf16 %v1813, %v1809
        %v1866 = vpack.c.bf16 %v1814, %v1810
        %v1867 = vpack.c.bf16 %v1815, %v1811
        %v1868 = vpack.c.bf16 %v1816, %v1812
        %v1869 = vpack.c.bf16 %v1821, %v1817
        %v1870 = vpack.c.bf16 %v1822, %v1818
        %v1871 = vpack.c.bf16 %v1823, %v1819
        %v1872 = vpack.c.bf16 %v1824, %v1820
        %v1873 = vpack.c.bf16 %v1829, %v1825
        %v1874 = vpack.c.bf16 %v1830, %v1826
        %v1875 = vpack.c.bf16 %v1831, %v1827
        %v1876 = vpack.c.bf16 %v1832, %v1828
        %v1877 = vpack.c.bf16 %v1837, %v1833
        %v1878 = vpack.c.bf16 %v1838, %v1834
        %v1879 = vpack.c.bf16 %v1839, %v1835
        %v1880 = vpack.c.bf16 %v1840, %v1836
        %v1881 = vpack.c.bf16 %v1845, %v1841
        %v1882 = vpack.c.bf16 %v1846, %v1842
        %v1883 = vpack.c.bf16 %v1847, %v1843
        %v1884 = vpack.c.bf16 %v1848, %v1844
        %v1885 = vpack.c.bf16 %v1853, %v1849
        %v1886 = vpack.c.bf16 %v1854, %v1850
        %v1887 = vpack.c.bf16 %v1855, %v1851
        %v1888 = vpack.c.bf16 %v1856, %v1852
        %v1889 = vld [vmem:[%s3] sm:$0xf]
        %v1890 = vld [vmem:[%s3 + $0x4] sm:$0xf]
        %v1891 = vld [vmem:[%s3 + $0x8] sm:$0xf]
        %v1892 = vld [vmem:[%s3 + $0xc] sm:$0xf]
        %v1893 = vld [vmem:[%s3 + $0x10] sm:$0xf]
        %v1894 = vld [vmem:[%s3 + $0x14] sm:$0xf]
        %v1895 = vld [vmem:[%s3 + $0x18] sm:$0xf]
        %v1896 = vld [vmem:[%s3 + $0x1c] sm:$0xf]
        %v1897 = vld [vmem:[%s3 + $0x20] sm:$0xf]
        %v1898 = vld [vmem:[%s3 + $0x24] sm:$0xf]
        %v1899 = vld [vmem:[%s3 + $0x28] sm:$0xf]
        %v1900 = vld [vmem:[%s3 + $0x2c] sm:$0xf]
        %v1901 = vld [vmem:[%s3 + $0x30] sm:$0xf]
        %v1902 = vld [vmem:[%s3 + $0x34] sm:$0xf]
        %v1903 = vld [vmem:[%s3 + $0x38] sm:$0xf]
        %v1904 = vld [vmem:[%s3 + $0x3c] sm:$0xf]
        %v1905 = vld [vmem:[%s3 + $0x40] sm:$0xf]
        %v1906 = vld [vmem:[%s3 + $0x44] sm:$0xf]
        %v1907 = vld [vmem:[%s3 + $0x48] sm:$0xf]
        %v1908 = vld [vmem:[%s3 + $0x4c] sm:$0xf]
        %v1909 = vld [vmem:[%s3 + $0x50] sm:$0xf]
        %v1910 = vld [vmem:[%s3 + $0x54] sm:$0xf]
        %v1911 = vld [vmem:[%s3 + $0x58] sm:$0xf]
        %v1912 = vld [vmem:[%s3 + $0x5c] sm:$0xf]
        %v1913 = vld [vmem:[%s3 + $0x60] sm:$0xf]
        %v1914 = vld [vmem:[%s3 + $0x64] sm:$0xf]
        %v1915 = vld [vmem:[%s3 + $0x68] sm:$0xf]
        %v1916 = vld [vmem:[%s3 + $0x6c] sm:$0xf]
        %v1917 = vld [vmem:[%s3 + $0x70] sm:$0xf]
        %v1918 = vld [vmem:[%s3 + $0x74] sm:$0xf]
        %v1919 = vld [vmem:[%s3 + $0x78] sm:$0xf]
        %v1920 = vld [vmem:[%s3 + $0x7c] sm:$0xf]
        %v1921 = vld [vmem:[%s3 + $0x80] sm:$0xf]
        %v1922 = vld [vmem:[%s3 + $0x84] sm:$0xf]
        %v1923 = vld [vmem:[%s3 + $0x88] sm:$0xf]
        %v1924 = vld [vmem:[%s3 + $0x8c] sm:$0xf]
        %v1925 = vld [vmem:[%s3 + $0x90] sm:$0xf]
        %v1926 = vld [vmem:[%s3 + $0x94] sm:$0xf]
        %v1927 = vld [vmem:[%s3 + $0x98] sm:$0xf]
        %v1928 = vld [vmem:[%s3 + $0x9c] sm:$0xf]
        %v1929 = vld [vmem:[%s3 + $0xa0] sm:$0xf]
        %v1930 = vld [vmem:[%s3 + $0xa4] sm:$0xf]
        %v1931 = vld [vmem:[%s3 + $0xa8] sm:$0xf]
        %v1932 = vld [vmem:[%s3 + $0xac] sm:$0xf]
        %v1933 = vld [vmem:[%s3 + $0xb0] sm:$0xf]
        %v1934 = vld [vmem:[%s3 + $0xb4] sm:$0xf]
        %v1935 = vld [vmem:[%s3 + $0xb8] sm:$0xf]
        %v1936 = vld [vmem:[%s3 + $0xbc] sm:$0xf]
        %v1937 = vld [vmem:[%s3 + $0xc0] sm:$0xf]
        %v1938 = vld [vmem:[%s3 + $0xc4] sm:$0xf]
        %v1939 = vld [vmem:[%s3 + $0xc8] sm:$0xf]
        %v1940 = vld [vmem:[%s3 + $0xcc] sm:$0xf]
        %v1941 = vld [vmem:[%s3 + $0xd0] sm:$0xf]
        %v1942 = vld [vmem:[%s3 + $0xd4] sm:$0xf]
        %v1943 = vld [vmem:[%s3 + $0xd8] sm:$0xf]
        %v1944 = vld [vmem:[%s3 + $0xdc] sm:$0xf]
        %v1945 = vld [vmem:[%s3 + $0xe0] sm:$0xf]
        %v1946 = vld [vmem:[%s3 + $0xe4] sm:$0xf]
        %v1947 = vld [vmem:[%s3 + $0xe8] sm:$0xf]
        %v1948 = vld [vmem:[%s3 + $0xec] sm:$0xf]
        %v2009 = vunpack.c.l.b16 %v1889
        %v2010 = vunpack.c.l.b16 %v1890
        %v2011 = vunpack.c.l.b16 %v1891
        %v2012 = vunpack.c.l.b16 %v1892
        %v2013 = vunpack.c.l.b16 %v1893
        %v2014 = vunpack.c.l.b16 %v1894
        %v2015 = vunpack.c.l.b16 %v1895
        %v2016 = vunpack.c.l.b16 %v1896
        %v2017 = vunpack.c.l.b16 %v1897
        %v2018 = vunpack.c.l.b16 %v1898
        %v2019 = vunpack.c.l.b16 %v1899
        %v2020 = vunpack.c.l.b16 %v1900
        %v2021 = vunpack.c.l.b16 %v1901
        %v2022 = vunpack.c.l.b16 %v1902
        %v2023 = vunpack.c.l.b16 %v1903
        %v2024 = vunpack.c.l.b16 %v1904
        %v2025 = vunpack.c.l.b16 %v1905
        %v2026 = vunpack.c.l.b16 %v1906
        %v2027 = vunpack.c.l.b16 %v1907
        %v2028 = vunpack.c.l.b16 %v1908
        %v2029 = vunpack.c.l.b16 %v1909
        %v2030 = vunpack.c.l.b16 %v1910
        %v2031 = vunpack.c.l.b16 %v1911
        %v2032 = vunpack.c.l.b16 %v1912
        %v2033 = vunpack.c.l.b16 %v1913
        %v2034 = vunpack.c.l.b16 %v1914
        %v2035 = vunpack.c.l.b16 %v1915
        %v2036 = vunpack.c.l.b16 %v1916
        %v2037 = vunpack.c.l.b16 %v1917
        %v2038 = vunpack.c.l.b16 %v1918
        %v2039 = vunpack.c.l.b16 %v1919
        %v2040 = vunpack.c.l.b16 %v1920
        %v2041 = vunpack.c.l.b16 %v1921
        %v2042 = vunpack.c.l.b16 %v1922
        %v2043 = vunpack.c.l.b16 %v1923
        %v2044 = vunpack.c.l.b16 %v1924
        %v2045 = vunpack.c.l.b16 %v1925
        %v2046 = vunpack.c.l.b16 %v1926
        %v2047 = vunpack.c.l.b16 %v1927
        %v2048 = vunpack.c.l.b16 %v1928
        %v2049 = vunpack.c.l.b16 %v1929
        %v2050 = vunpack.c.l.b16 %v1930
        %v2051 = vunpack.c.l.b16 %v1931
        %v2052 = vunpack.c.l.b16 %v1932
        %v2053 = vunpack.c.l.b16 %v1933
        %v2054 = vunpack.c.l.b16 %v1934
        %v2055 = vunpack.c.l.b16 %v1935
        %v2056 = vunpack.c.l.b16 %v1936
        %v2057 = vunpack.c.l.b16 %v1937
        %v2058 = vunpack.c.l.b16 %v1938
        %v2059 = vunpack.c.l.b16 %v1939
        %v2060 = vunpack.c.l.b16 %v1940
        %v2061 = vunpack.c.l.b16 %v1941
        %v2062 = vunpack.c.l.b16 %v1942
        %v2063 = vunpack.c.l.b16 %v1943
        %v2064 = vunpack.c.l.b16 %v1944
        %v2065 = vunpack.c.l.b16 %v1945
        %v2066 = vunpack.c.l.b16 %v1946
        %v2067 = vunpack.c.l.b16 %v1947
        %v2068 = vunpack.c.l.b16 %v1948
        %v2069 = vpack.c.b16 %v2010, %v2009
        %v2070 = vpack.c.b16 %v2012, %v2011
        %v2071 = vpack.c.b16 %v2014, %v2013
        %v2072 = vpack.c.b16 %v2016, %v2015
        %v2073 = vpack.c.b16 %v2018, %v2017
        %v2074 = vpack.c.b16 %v2020, %v2019
        %v2075 = vpack.c.b16 %v2022, %v2021
        %v2076 = vpack.c.b16 %v2024, %v2023
        %v2077 = vpack.c.b16 %v2026, %v2025
        %v2078 = vpack.c.b16 %v2028, %v2027
        %v2079 = vpack.c.b16 %v2030, %v2029
        %v2080 = vpack.c.b16 %v2032, %v2031
        %v2081 = vpack.c.b16 %v2034, %v2033
        %v2082 = vpack.c.b16 %v2036, %v2035
        %v2083 = vpack.c.b16 %v2038, %v2037
        %v2084 = vpack.c.b16 %v2040, %v2039
        %v2085 = vpack.c.b16 %v2042, %v2041
        %v2086 = vpack.c.b16 %v2044, %v2043
        %v2087 = vpack.c.b16 %v2046, %v2045
        %v2088 = vpack.c.b16 %v2048, %v2047
        %v2089 = vpack.c.b16 %v2050, %v2049
        %v2090 = vpack.c.b16 %v2052, %v2051
        %v2091 = vpack.c.b16 %v2054, %v2053
        %v2092 = vpack.c.b16 %v2056, %v2055
        %v2093 = vpack.c.b16 %v2058, %v2057
        %v2094 = vpack.c.b16 %v2060, %v2059
        %v2095 = vpack.c.b16 %v2062, %v2061
        %v2096 = vpack.c.b16 %v2064, %v2063
        %v2097 = vpack.c.b16 %v2066, %v2065
        %v2098 = vpack.c.b16 %v2068, %v2067
        %vm2129 = vcmask 785408
        %v2131 = vsel %vm2129, %v1860, 0
        %v2134 = vsel %vm2129, %v1864, 0
        %v2137 = vsel %vm2129, %v1868, 0
        %v2140 = vsel %vm2129, %v1872, 0
        %v2143 = vsel %vm2129, %v1876, 0
        %v2146 = vsel %vm2129, %v1880, 0
        %v2149 = vsel %vm2129, %v1884, 0
        %v2152 = vsel %vm2129, %v1888, 0
        %2154 = vmatprep.subr.bf16.mxu0 0
        %2155 = vmatpush1.bf16.msra.mxu0 %v2069
        %2156 = vmatprep.subr.bf16.mxu0 0
        %2157 = vmatpush1.bf16.msra.mxu0 %v2070
        %2158 = vmatprep.subr.bf16.mxu0 0
        %2159 = vmatpush1.bf16.msra.mxu0 %v2071
        %2160 = vmatprep.subr.bf16.mxu0 0
        %2161 = vmatpush1.bf16.msra.mxu0 %v2072
        %2162 = vmatprep.subr.bf16.mxu0 0
        %2163 = vmatpush1.bf16.msra.mxu0 %v2073
        %2164 = vmatprep.subr.bf16.mxu0 0
        %2165 = vmatpush1.bf16.msra.mxu0 %v2074
        %2166 = vmatprep.subr.bf16.mxu0 0
        %2167 = vmatpush1.bf16.msra.mxu0 %v2075
        %2168 = vmatprep.subr.bf16.mxu0 0
        %2169 = vmatpush1.bf16.msra.mxu0 %v2076
        %2170 = vmatprep.subr.bf16.mxu0 0
        %2171 = vmatpush1.bf16.msra.mxu0 %v2077
        %2172 = vmatprep.subr.bf16.mxu0 0
        %2173 = vmatpush1.bf16.msra.mxu0 %v2078
        %2174 = vmatprep.subr.bf16.mxu0 0
        %2175 = vmatpush1.bf16.msra.mxu0 %v2079
        %2176 = vmatprep.subr.bf16.mxu0 0
        %2177 = vmatpush1.bf16.msra.mxu0 %v2080
        %2178 = vmatprep.subr.bf16.mxu0 0
        %2179 = vmatpush1.bf16.msra.mxu0 %v2081
        %2180 = vmatprep.subr.bf16.mxu0 0
        %2181 = vmatpush1.bf16.msra.mxu0 %v2082
        %2182 = vmatprep.subr.bf16.mxu0 0
        %2183 = vmatpush1.bf16.msra.mxu0 %v2083
        %2184 = vmatprep.subr.bf16.mxu0 0
        %2185 = vmatpush1.bf16.msra.mxu0 %v2084
        %2186 = vmatprep.mubr.bf16.mxu0 %v1858
        %2187 = vmatmul.mubr.bf16.gmra.mrb[0].mxu0 %v1857
        %v2188 = vpop.f32.mrb[0].mxu0
        %v2189 = vadd.f32 0.0, %v2188
        %v2190 = vpop.f32.mrb[0].mxu0
        %v2191 = vpop.f32.mrb[0].mxu0
        %v2192 = vadd.f32 0.0, %v2191
        %v2193 = vpop.f32.mrb[0].mxu0
        %2194 = vmatprep.mubr.bf16.mxu0 %v1862
        %2195 = vmatmul.mubr.bf16.gmra.mrb[0].mxu0 %v1861
        %v2196 = vpop.f32.mrb[0].mxu0
        %v2197 = vadd.f32 0.0, %v2196
        %v2198 = vpop.f32.mrb[0].mxu0
        %v2199 = vpop.f32.mrb[0].mxu0
        %v2200 = vadd.f32 0.0, %v2199
        %v2201 = vpop.f32.mrb[0].mxu0
        %2202 = vmatprep.mubr.bf16.mxu0 %v1866
        %2203 = vmatmul.mubr.bf16.gmra.mrb[0].mxu0 %v1865
        %v2204 = vpop.f32.mrb[0].mxu0
        %v2205 = vadd.f32 0.0, %v2204
        %v2206 = vpop.f32.mrb[0].mxu0
        %v2207 = vpop.f32.mrb[0].mxu0
        %v2208 = vadd.f32 0.0, %v2207
        %v2209 = vpop.f32.mrb[0].mxu0
        %2210 = vmatprep.mubr.bf16.mxu0 %v1870
        %2211 = vmatmul.mubr.bf16.gmra.mrb[0].mxu0 %v1869
        %v2212 = vpop.f32.mrb[0].mxu0
        %v2213 = vadd.f32 0.0, %v2212
        %v2214 = vpop.f32.mrb[0].mxu0
        %v2215 = vpop.f32.mrb[0].mxu0
        %v2216 = vadd.f32 0.0, %v2215
        %v2217 = vpop.f32.mrb[0].mxu0
        %2218 = vmatprep.mubr.bf16.mxu0 %v1874
        %2219 = vmatmul.mubr.bf16.gmra.mrb[0].mxu0 %v1873
        %v2220 = vpop.f32.mrb[0].mxu0
        %v2221 = vadd.f32 0.0, %v2220
        %v2222 = vpop.f32.mrb[0].mxu0
        %v2223 = vpop.f32.mrb[0].mxu0
        %v2224 = vadd.f32 0.0, %v2223
        %v2225 = vpop.f32.mrb[0].mxu0
        %2226 = vmatprep.mubr.bf16.mxu0 %v1878
        %2227 = vmatmul.mubr.bf16.gmra.mrb[0].mxu0 %v1877
        %v2228 = vpop.f32.mrb[0].mxu0
        %v2229 = vadd.f32 0.0, %v2228
        %v2230 = vpop.f32.mrb[0].mxu0
        %v2231 = vpop.f32.mrb[0].mxu0
        %v2232 = vadd.f32 0.0, %v2231
        %v2233 = vpop.f32.mrb[0].mxu0
        %2234 = vmatprep.mubr.bf16.mxu0 %v1882
        %2235 = vmatmul.mubr.bf16.gmra.mrb[0].mxu0 %v1881
        %v2236 = vpop.f32.mrb[0].mxu0
        %v2237 = vadd.f32 0.0, %v2236
        %v2238 = vpop.f32.mrb[0].mxu0
        %v2239 = vpop.f32.mrb[0].mxu0
        %v2240 = vadd.f32 0.0, %v2239
        %v2241 = vpop.f32.mrb[0].mxu0
        %2242 = vmatprep.mubr.bf16.mxu0 %v1886
        %2243 = vmatmul.mubr.bf16.gmra.mrb[0].mxu0 %v1885
        %v2244 = vpop.f32.mrb[0].mxu0
        %v2245 = vadd.f32 0.0, %v2244
        %v2246 = vpop.f32.mrb[0].mxu0
        %v2247 = vpop.f32.mrb[0].mxu0
        %v2248 = vadd.f32 0.0, %v2247
        %v2249 = vpop.f32.mrb[0].mxu0
        %2250 = vdwg.mxu0
        %2251 = vmatprep.subr.bf16.mxu0 0
        %2252 = vmatpush1.bf16.msra.mxu0 %v2085
        %2253 = vmatprep.subr.bf16.mxu0 0
        %2254 = vmatpush1.bf16.msra.mxu0 %v2086
        %2255 = vmatprep.subr.bf16.mxu0 0
        %2256 = vmatpush1.bf16.msra.mxu0 %v2087
        %2257 = vmatprep.subr.bf16.mxu0 0
        %2258 = vmatpush1.bf16.msra.mxu0 %v2088
        %2259 = vmatprep.subr.bf16.mxu0 0
        %2260 = vmatpush1.bf16.msra.mxu0 %v2089
        %2261 = vmatprep.subr.bf16.mxu0 0
        %2262 = vmatpush1.bf16.msra.mxu0 %v2090
        %2263 = vmatprep.subr.bf16.mxu0 0
        %2264 = vmatpush1.bf16.msra.mxu0 %v2091
        %2265 = vmatprep.subr.bf16.mxu0 0
        %2266 = vmatpush1.bf16.msra.mxu0 %v2092
        %2267 = vmatprep.subr.bf16.mxu0 0
        %2268 = vmatpush1.bf16.msra.mxu0 %v2093
        %2269 = vmatprep.subr.bf16.mxu0 0
        %2270 = vmatpush1.bf16.msra.mxu0 %v2094
        %2271 = vmatprep.subr.bf16.mxu0 0
        %2272 = vmatpush1.bf16.msra.mxu0 %v2095
        %2273 = vmatprep.subr.bf16.mxu0 0
        %2274 = vmatpush1.bf16.msra.mxu0 %v2096
        %2275 = vmatprep.subr.bf16.mxu0 0
        %2276 = vmatpush1.bf16.msra.mxu0 %v2097
        %2277 = vmatprep.subr.bf16.mxu0 0
        %2278 = vmatpush1.bf16.msra.mxu0 %v2098
        %2279 = vmatprep.subr.bf16.mxu0 0
        %2280 = vmatpush1.bf16.msra.mxu0 0
        %2281 = vmatprep.subr.bf16.mxu0 0
        %2282 = vmatpush1.bf16.msra.mxu0 0
        %2283 = vmatprep.mubr.bf16.mxu0 %v2131
        %2284 = vmatmul.mubr.bf16.gmra.mrb[0].mxu0 %v1859
        %v2285 = vpop.f32.mrb[0].mxu0
        %v2286 = vadd.f32 %v2189, %v2285
        %v2287 = vpop.f32.mrb[0].mxu0
        %v2288 = vpop.f32.mrb[0].mxu0
        %v2289 = vadd.f32 %v2192, %v2288
        %v2290 = vpop.f32.mrb[0].mxu0
        %2291 = vmatprep.mubr.bf16.mxu0 %v2134
        %2292 = vmatmul.mubr.bf16.gmra.mrb[0].mxu0 %v1863
        %v2293 = vpop.f32.mrb[0].mxu0
        %v2294 = vadd.f32 %v2197, %v2293
        %v2295 = vpop.f32.mrb[0].mxu0
        %v2296 = vpop.f32.mrb[0].mxu0
        %v2297 = vadd.f32 %v2200, %v2296
        %v2298 = vpop.f32.mrb[0].mxu0
        %2299 = vmatprep.mubr.bf16.mxu0 %v2137
        %2300 = vmatmul.mubr.bf16.gmra.mrb[0].mxu0 %v1867
        %v2301 = vpop.f32.mrb[0].mxu0
        %v2302 = vadd.f32 %v2205, %v2301
        %v2303 = vpop.f32.mrb[0].mxu0
        %v2304 = vpop.f32.mrb[0].mxu0
        %v2305 = vadd.f32 %v2208, %v2304
        %v2306 = vpop.f32.mrb[0].mxu0
        %2307 = vmatprep.mubr.bf16.mxu0 %v2140
        %2308 = vmatmul.mubr.bf16.gmra.mrb[0].mxu0 %v1871
        %v2309 = vpop.f32.mrb[0].mxu0
        %v2310 = vadd.f32 %v2213, %v2309
        %v2311 = vpop.f32.mrb[0].mxu0
        %v2312 = vpop.f32.mrb[0].mxu0
        %v2313 = vadd.f32 %v2216, %v2312
        %v2314 = vpop.f32.mrb[0].mxu0
        %2315 = vmatprep.mubr.bf16.mxu0 %v2143
        %2316 = vmatmul.mubr.bf16.gmra.mrb[0].mxu0 %v1875
        %v2317 = vpop.f32.mrb[0].mxu0
        %v2318 = vadd.f32 %v2221, %v2317
        %v2319 = vpop.f32.mrb[0].mxu0
        %v2320 = vpop.f32.mrb[0].mxu0
        %v2321 = vadd.f32 %v2224, %v2320
        %v2322 = vpop.f32.mrb[0].mxu0
        %2323 = vmatprep.mubr.bf16.mxu0 %v2146
        %2324 = vmatmul.mubr.bf16.gmra.mrb[0].mxu0 %v1879
        %v2325 = vpop.f32.mrb[0].mxu0
        %v2326 = vadd.f32 %v2229, %v2325
        %v2327 = vpop.f32.mrb[0].mxu0
        %v2328 = vpop.f32.mrb[0].mxu0
        %v2329 = vadd.f32 %v2232, %v2328
        %v2330 = vpop.f32.mrb[0].mxu0
        %2331 = vmatprep.mubr.bf16.mxu0 %v2149
        %2332 = vmatmul.mubr.bf16.gmra.mrb[0].mxu0 %v1883
        %v2333 = vpop.f32.mrb[0].mxu0
        %v2334 = vadd.f32 %v2237, %v2333
        %v2335 = vpop.f32.mrb[0].mxu0
        %v2336 = vpop.f32.mrb[0].mxu0
        %v2337 = vadd.f32 %v2240, %v2336
        %v2338 = vpop.f32.mrb[0].mxu0
        %2339 = vmatprep.mubr.bf16.mxu0 %v2152
        %2340 = vmatmul.mubr.bf16.gmra.mrb[0].mxu0 %v1887
        %v2341 = vpop.f32.mrb[0].mxu0
        %v2342 = vadd.f32 %v2245, %v2341
        %v2343 = vpop.f32.mrb[0].mxu0
        %v2344 = vpop.f32.mrb[0].mxu0
        %v2345 = vadd.f32 %v2248, %v2344
        %v2346 = vpop.f32.mrb[0].mxu0
        %2347 = vdwg.mxu0
        %2348 = vst.msk [vmem:[%s400] sm:$0xff] %vm1077, %v1234
        %2349 = vst.msk [vmem:[%s400 + $0x8] sm:$0xff] %vm1077, %v1237
        %2350 = vst.msk [vmem:[%s400 + $0x10] sm:$0xff] %vm1077, %v1242
        %2351 = vst.msk [vmem:[%s400 + $0x18] sm:$0xff] %vm1077, %v1245
        %2352 = vst.msk [vmem:[%s400 + $0x20] sm:$0xff] %vm1077, %v1250
        %2353 = vst.msk [vmem:[%s400 + $0x28] sm:$0xff] %vm1077, %v1253
        %2354 = vst.msk [vmem:[%s400 + $0x30] sm:$0xff] %vm1077, %v1258
        %2355 = vst.msk [vmem:[%s400 + $0x38] sm:$0xff] %vm1077, %v1261
        %2356 = vst.msk [vmem:[%s400 + $0x40] sm:$0xff] %vm1077, %v1266
        %2357 = vst.msk [vmem:[%s400 + $0x48] sm:$0xff] %vm1077, %v1269
        %2358 = vst.msk [vmem:[%s400 + $0x50] sm:$0xff] %vm1077, %v1274
        %2359 = vst.msk [vmem:[%s400 + $0x58] sm:$0xff] %vm1077, %v1277
        %2360 = vst.msk [vmem:[%s400 + $0x60] sm:$0xff] %vm1077, %v1282
        %2361 = vst.msk [vmem:[%s400 + $0x68] sm:$0xff] %vm1077, %v1285
        %2362 = vst.msk [vmem:[%s400 + $0x70] sm:$0xff] %vm1077, %v1290
        %2363 = vst.msk [vmem:[%s400 + $0x78] sm:$0xff] %vm1077, %v1293
        %2364 = vst.msk [vmem:[%s406] sm:$0xff] %vm1077, %v2286
        %2365 = vst.msk [vmem:[%s406 + $0x8] sm:$0xff] %vm1077, %v2289
        %2366 = vst.msk [vmem:[%s406 + $0x10] sm:$0xff] %vm1077, %v2294
        %2367 = vst.msk [vmem:[%s406 + $0x18] sm:$0xff] %vm1077, %v2297
        %2368 = vst.msk [vmem:[%s406 + $0x20] sm:$0xff] %vm1077, %v2302
        %2369 = vst.msk [vmem:[%s406 + $0x28] sm:$0xff] %vm1077, %v2305
        %2370 = vst.msk [vmem:[%s406 + $0x30] sm:$0xff] %vm1077, %v2310
        %2371 = vst.msk [vmem:[%s406 + $0x38] sm:$0xff] %vm1077, %v2313
        %2372 = vst.msk [vmem:[%s406 + $0x40] sm:$0xff] %vm1077, %v2318
        %2373 = vst.msk [vmem:[%s406 + $0x48] sm:$0xff] %vm1077, %v2321
        %2374 = vst.msk [vmem:[%s406 + $0x50] sm:$0xff] %vm1077, %v2326
        %2375 = vst.msk [vmem:[%s406 + $0x58] sm:$0xff] %vm1077, %v2329
        %2376 = vst.msk [vmem:[%s406 + $0x60] sm:$0xff] %vm1077, %v2334
        %2377 = vst.msk [vmem:[%s406 + $0x68] sm:$0xff] %vm1077, %v2337
        %2378 = vst.msk [vmem:[%s406 + $0x70] sm:$0xff] %vm1077, %v2342
        %2379 = vst.msk [vmem:[%s406 + $0x78] sm:$0xff] %vm1077, %v2345
        %v2380 = vpack.c.bf16 %v1237, %v1234
        %v2381 = vpack.c.bf16 %v1245, %v1242
        %v2382 = vpack.c.bf16 %v1253, %v1250
        %v2383 = vpack.c.bf16 %v1261, %v1258
        %v2384 = vpack.c.bf16 %v1269, %v1266
        %v2385 = vpack.c.bf16 %v1277, %v1274
        %v2386 = vpack.c.bf16 %v1285, %v1282
        %v2387 = vpack.c.bf16 %v1293, %v1290
        %v2388 = vld [vmem:[%s4] sm:$0xf]
        %v2389 = vld [vmem:[%s4 + $0x4] sm:$0xf]
        %v2390 = vld [vmem:[%s4 + $0x8] sm:$0xf]
        %v2391 = vld [vmem:[%s4 + $0xc] sm:$0xf]
        %v2392 = vpack.c.bf16 %v2289, %v2286
        %v2393 = vpack.c.bf16 %v2297, %v2294
        %v2394 = vpack.c.bf16 %v2305, %v2302
        %v2395 = vpack.c.bf16 %v2313, %v2310
        %v2396 = vpack.c.bf16 %v2321, %v2318
        %v2397 = vpack.c.bf16 %v2329, %v2326
        %v2398 = vpack.c.bf16 %v2337, %v2334
        %v2399 = vpack.c.bf16 %v2345, %v2342
        %v2400 = vld [vmem:[%s5] sm:$0xf]
        %v2401 = vld [vmem:[%s5 + $0x4] sm:$0xf]
        %v2402 = vld [vmem:[%s5 + $0x8] sm:$0xf]
        %v2403 = vld [vmem:[%s5 + $0xc] sm:$0xf]
        %v2408 = vunpack.c.l.b16 %v2400
        %v2409 = vunpack.c.l.b16 %v2401
        %v2410 = vunpack.c.l.b16 %v2402
        %v2411 = vunpack.c.l.b16 %v2403
        %v2412 = vpack.c.b16 %v2409, %v2408
        %v2413 = vpack.c.b16 %v2411, %v2410
        %v2417 = vsel %vm1077, %v2392, 0
        %v2420 = vsel %vm1077, %v2393, 0
        %v2423 = vsel %vm1077, %v2394, 0
        %v2426 = vsel %vm1077, %v2395, 0
        %v2429 = vsel %vm1077, %v2396, 0
        %v2432 = vsel %vm1077, %v2397, 0
        %v2435 = vsel %vm1077, %v2398, 0
        %v2438 = vsel %vm1077, %v2399, 0
        %2440 = vmatprep.subr.bf16.mxu0 0
        %2441 = vmatpush1.bf16.msra.mxu0 %v2412
        %2442 = vmatprep.subr.bf16.mxu0 0
        %2443 = vmatpush1.bf16.msra.mxu0 %v2413
        %2444 = vmatprep.subr.bf16.mxu0 0
        %2445 = vmatpush1.bf16.msra.mxu0 0
        %2446 = vmatprep.subr.bf16.mxu0 0
        %2447 = vmatpush1.bf16.msra.mxu0 0
        %2448 = vmatprep.subr.bf16.mxu0 0
        %2449 = vmatpush1.bf16.msra.mxu0 0
        %2450 = vmatprep.subr.bf16.mxu0 0
        %2451 = vmatpush1.bf16.msra.mxu0 0
        %2452 = vmatprep.subr.bf16.mxu0 0
        %2453 = vmatpush1.bf16.msra.mxu0 0
        %2454 = vmatprep.subr.bf16.mxu0 0
        %2455 = vmatpush1.bf16.msra.mxu0 0
        %2456 = vmatprep.subr.bf16.mxu0 0
        %2457 = vmatpush1.bf16.msra.mxu0 0
        %2458 = vmatprep.subr.bf16.mxu0 0
        %2459 = vmatpush1.bf16.msra.mxu0 0
        %2460 = vmatprep.subr.bf16.mxu0 0
        %2461 = vmatpush1.bf16.msra.mxu0 0
        %2462 = vmatprep.subr.bf16.mxu0 0
        %2463 = vmatpush1.bf16.msra.mxu0 0
        %2464 = vmatprep.subr.bf16.mxu0 0
        %2465 = vmatpush1.bf16.msra.mxu0 0
        %2466 = vmatprep.subr.bf16.mxu0 0
        %2467 = vmatpush1.bf16.msra.mxu0 0
        %2468 = vmatprep.subr.bf16.mxu0 0
        %2469 = vmatpush1.bf16.msra.mxu0 0
        %2470 = vmatprep.subr.bf16.mxu0 0
        %2471 = vmatpush1.bf16.msra.mxu0 0
        %2472 = vmatprep.mubr.bf16.mxu0 0
        %2473 = vmatmul.mubr.bf16.gmra.mrb[0].mxu0 %v2417
        %v2474 = vpop.f32.mrb[0].mxu0
        %v2475 = vadd.f32 0.0, %v2474
        %v2476 = vpop.f32.mrb[0].mxu0
        %v2477 = vpop.f32.mrb[0].mxu0
        %v2478 = vadd.f32 0.0, %v2477
        %v2479 = vpop.f32.mrb[0].mxu0
        %2480 = vmatprep.mubr.bf16.mxu0 0
        %2481 = vmatmul.mubr.bf16.gmra.mrb[0].mxu0 %v2420
        %v2482 = vpop.f32.mrb[0].mxu0
        %v2483 = vadd.f32 0.0, %v2482
        %v2484 = vpop.f32.mrb[0].mxu0
        %v2485 = vpop.f32.mrb[0].mxu0
        %v2486 = vadd.f32 0.0, %v2485
        %v2487 = vpop.f32.mrb[0].mxu0
        %2488 = vmatprep.mubr.bf16.mxu0 0
        %2489 = vmatmul.mubr.bf16.gmra.mrb[0].mxu0 %v2423
        %v2490 = vpop.f32.mrb[0].mxu0
        %v2491 = vadd.f32 0.0, %v2490
        %v2492 = vpop.f32.mrb[0].mxu0
        %v2493 = vpop.f32.mrb[0].mxu0
        %v2494 = vadd.f32 0.0, %v2493
        %v2495 = vpop.f32.mrb[0].mxu0
        %2496 = vmatprep.mubr.bf16.mxu0 0
        %2497 = vmatmul.mubr.bf16.gmra.mrb[0].mxu0 %v2426
        %v2498 = vpop.f32.mrb[0].mxu0
        %v2499 = vadd.f32 0.0, %v2498
        %v2500 = vpop.f32.mrb[0].mxu0
        %v2501 = vpop.f32.mrb[0].mxu0
        %v2502 = vadd.f32 0.0, %v2501
        %v2503 = vpop.f32.mrb[0].mxu0
        %2504 = vmatprep.mubr.bf16.mxu0 0
        %2505 = vmatmul.mubr.bf16.gmra.mrb[0].mxu0 %v2429
        %v2506 = vpop.f32.mrb[0].mxu0
        %v2507 = vadd.f32 0.0, %v2506
        %v2508 = vpop.f32.mrb[0].mxu0
        %v2509 = vpop.f32.mrb[0].mxu0
        %v2510 = vadd.f32 0.0, %v2509
        %v2511 = vpop.f32.mrb[0].mxu0
        %2512 = vmatprep.mubr.bf16.mxu0 0
        %2513 = vmatmul.mubr.bf16.gmra.mrb[0].mxu0 %v2432
        %v2514 = vpop.f32.mrb[0].mxu0
        %v2515 = vadd.f32 0.0, %v2514
        %v2516 = vpop.f32.mrb[0].mxu0
        %v2517 = vpop.f32.mrb[0].mxu0
        %v2518 = vadd.f32 0.0, %v2517
        %v2519 = vpop.f32.mrb[0].mxu0
        %2520 = vmatprep.mubr.bf16.mxu0 0
        %2521 = vmatmul.mubr.bf16.gmra.mrb[0].mxu0 %v2435
        %v2522 = vpop.f32.mrb[0].mxu0
        %v2523 = vadd.f32 0.0, %v2522
        %v2524 = vpop.f32.mrb[0].mxu0
        %v2525 = vpop.f32.mrb[0].mxu0
        %v2526 = vadd.f32 0.0, %v2525
        %v2527 = vpop.f32.mrb[0].mxu0
        %2528 = vmatprep.mubr.bf16.mxu0 0
        %2529 = vmatmul.mubr.bf16.gmra.mrb[0].mxu0 %v2438
        %v2530 = vpop.f32.mrb[0].mxu0
        %v2531 = vadd.f32 0.0, %v2530
        %v2532 = vpop.f32.mrb[0].mxu0
        %v2533 = vpop.f32.mrb[0].mxu0
        %v2534 = vadd.f32 0.0, %v2533
        %v2535 = vpop.f32.mrb[0].mxu0
        %2536 = vdwg.mxu0
        %v2541 = vunpack.c.l.b16 %v2388
        %v2542 = vunpack.c.l.b16 %v2389
        %v2543 = vunpack.c.l.b16 %v2390
        %v2544 = vunpack.c.l.b16 %v2391
        %v2545 = vpack.c.b16 %v2542, %v2541
        %v2546 = vpack.c.b16 %v2544, %v2543
        %v2550 = vsel %vm1077, %v2380, 0
        %v2553 = vsel %vm1077, %v2381, 0
        %v2556 = vsel %vm1077, %v2382, 0
        %v2559 = vsel %vm1077, %v2383, 0
        %v2562 = vsel %vm1077, %v2384, 0
        %v2565 = vsel %vm1077, %v2385, 0
        %v2568 = vsel %vm1077, %v2386, 0
        %v2571 = vsel %vm1077, %v2387, 0
        %2573 = vmatprep.subr.bf16.mxu0 0
        %2574 = vmatpush1.bf16.msra.mxu0 %v2545
        %2575 = vmatprep.subr.bf16.mxu0 0
        %2576 = vmatpush1.bf16.msra.mxu0 %v2546
        %2577 = vmatprep.subr.bf16.mxu0 0
        %2578 = vmatpush1.bf16.msra.mxu0 0
        %2579 = vmatprep.subr.bf16.mxu0 0
        %2580 = vmatpush1.bf16.msra.mxu0 0
        %2581 = vmatprep.subr.bf16.mxu0 0
        %2582 = vmatpush1.bf16.msra.mxu0 0
        %2583 = vmatprep.subr.bf16.mxu0 0
        %2584 = vmatpush1.bf16.msra.mxu0 0
        %2585 = vmatprep.subr.bf16.mxu0 0
        %2586 = vmatpush1.bf16.msra.mxu0 0
        %2587 = vmatprep.subr.bf16.mxu0 0
        %2588 = vmatpush1.bf16.msra.mxu0 0
        %2589 = vmatprep.subr.bf16.mxu0 0
        %2590 = vmatpush1.bf16.msra.mxu0 0
        %2591 = vmatprep.subr.bf16.mxu0 0
        %2592 = vmatpush1.bf16.msra.mxu0 0
        %2593 = vmatprep.subr.bf16.mxu0 0
        %2594 = vmatpush1.bf16.msra.mxu0 0
        %2595 = vmatprep.subr.bf16.mxu0 0
        %2596 = vmatpush1.bf16.msra.mxu0 0
        %2597 = vmatprep.subr.bf16.mxu0 0
        %2598 = vmatpush1.bf16.msra.mxu0 0
        %2599 = vmatprep.subr.bf16.mxu0 0
        %2600 = vmatpush1.bf16.msra.mxu0 0
        %2601 = vmatprep.subr.bf16.mxu0 0
        %2602 = vmatpush1.bf16.msra.mxu0 0
        %2603 = vmatprep.subr.bf16.mxu0 0
        %2604 = vmatpush1.bf16.msra.mxu0 0
        %2605 = vmatprep.mubr.bf16.mxu0 0
        %2606 = vmatmul.mubr.bf16.gmra.mrb[0].mxu0 %v2550
        %v2607 = vpop.f32.mrb[0].mxu0
        %v2608 = vadd.f32 %v2475, %v2607
        %v2609 = vpop.f32.mrb[0].mxu0
        %v2610 = vpop.f32.mrb[0].mxu0
        %v2611 = vadd.f32 %v2478, %v2610
        %v2612 = vpop.f32.mrb[0].mxu0
        %2613 = vmatprep.mubr.bf16.mxu0 0
        %2614 = vmatmul.mubr.bf16.gmra.mrb[0].mxu0 %v2553
        %v2615 = vpop.f32.mrb[0].mxu0
        %v2616 = vadd.f32 %v2483, %v2615
        %v2617 = vpop.f32.mrb[0].mxu0
        %v2618 = vpop.f32.mrb[0].mxu0
        %v2619 = vadd.f32 %v2486, %v2618
        %v2620 = vpop.f32.mrb[0].mxu0
        %2621 = vmatprep.mubr.bf16.mxu0 0
        %2622 = vmatmul.mubr.bf16.gmra.mrb[0].mxu0 %v2556
        %v2623 = vpop.f32.mrb[0].mxu0
        %v2624 = vadd.f32 %v2491, %v2623
        %v2625 = vpop.f32.mrb[0].mxu0
        %v2626 = vpop.f32.mrb[0].mxu0
        %v2627 = vadd.f32 %v2494, %v2626
        %v2628 = vpop.f32.mrb[0].mxu0
        %2629 = vmatprep.mubr.bf16.mxu0 0
        %2630 = vmatmul.mubr.bf16.gmra.mrb[0].mxu0 %v2559
        %v2631 = vpop.f32.mrb[0].mxu0
        %v2632 = vadd.f32 %v2499, %v2631
        %v2633 = vpop.f32.mrb[0].mxu0
        %v2634 = vpop.f32.mrb[0].mxu0
        %v2635 = vadd.f32 %v2502, %v2634
        %v2636 = vpop.f32.mrb[0].mxu0
        %2637 = vmatprep.mubr.bf16.mxu0 0
        %2638 = vmatmul.mubr.bf16.gmra.mrb[0].mxu0 %v2562
        %v2639 = vpop.f32.mrb[0].mxu0
        %v2640 = vadd.f32 %v2507, %v2639
        %v2641 = vpop.f32.mrb[0].mxu0
        %v2642 = vpop.f32.mrb[0].mxu0
        %v2643 = vadd.f32 %v2510, %v2642
        %v2644 = vpop.f32.mrb[0].mxu0
        %2645 = vmatprep.mubr.bf16.mxu0 0
        %2646 = vmatmul.mubr.bf16.gmra.mrb[0].mxu0 %v2565
        %v2647 = vpop.f32.mrb[0].mxu0
        %v2648 = vadd.f32 %v2515, %v2647
        %v2649 = vpop.f32.mrb[0].mxu0
        %v2650 = vpop.f32.mrb[0].mxu0
        %v2651 = vadd.f32 %v2518, %v2650
        %v2652 = vpop.f32.mrb[0].mxu0
        %2653 = vmatprep.mubr.bf16.mxu0 0
        %2654 = vmatmul.mubr.bf16.gmra.mrb[0].mxu0 %v2568
        %v2655 = vpop.f32.mrb[0].mxu0
        %v2656 = vadd.f32 %v2523, %v2655
        %v2657 = vpop.f32.mrb[0].mxu0
        %v2658 = vpop.f32.mrb[0].mxu0
        %v2659 = vadd.f32 %v2526, %v2658
        %v2660 = vpop.f32.mrb[0].mxu0
        %2661 = vmatprep.mubr.bf16.mxu0 0
        %2662 = vmatmul.mubr.bf16.gmra.mrb[0].mxu0 %v2571
        %v2663 = vpop.f32.mrb[0].mxu0
        %v2664 = vadd.f32 %v2531, %v2663
        %v2665 = vpop.f32.mrb[0].mxu0
        %v2666 = vpop.f32.mrb[0].mxu0
        %v2667 = vadd.f32 %v2534, %v2666
        %v2668 = vpop.f32.mrb[0].mxu0
        %2669 = vdwg.mxu0
        %v2670 = vld [vmem:[%s6] sm:$0x1]
        %v2672 = vlaneseq
        %v2673 = vshrl.u32 %v2672, 7
        %v2674 = vsub.s32 0, %v2673
        %v2675 = vrot.slane %v2670, %v2674
        %v2677 = vadd.f32 %v2608, %v2675
        %v2678 = vadd.f32 %v2611, %v2675
        %v2679 = vadd.f32 %v2616, %v2675
        %v2680 = vadd.f32 %v2619, %v2675
        %v2681 = vadd.f32 %v2624, %v2675
        %v2682 = vadd.f32 %v2627, %v2675
        %v2683 = vadd.f32 %v2632, %v2675
        %v2684 = vadd.f32 %v2635, %v2675
        %v2685 = vadd.f32 %v2640, %v2675
        %v2686 = vadd.f32 %v2643, %v2675
        %v2687 = vadd.f32 %v2648, %v2675
        %v2688 = vadd.f32 %v2651, %v2675
        %v2689 = vadd.f32 %v2656, %v2675
        %v2690 = vadd.f32 %v2659, %v2675
        %v2691 = vadd.f32 %v2664, %v2675
        %v2692 = vadd.f32 %v2667, %v2675
        %v2693 = vmax.f32 %v2677, 0.0
        %v2694 = vmax.f32 %v2678, 0.0
        %v2695 = vmax.f32 %v2679, 0.0
        %v2696 = vmax.f32 %v2680, 0.0
        %v2697 = vmax.f32 %v2681, 0.0
        %v2698 = vmax.f32 %v2682, 0.0
        %v2699 = vmax.f32 %v2683, 0.0
        %v2700 = vmax.f32 %v2684, 0.0
        %v2701 = vmax.f32 %v2685, 0.0
        %v2702 = vmax.f32 %v2686, 0.0
        %v2703 = vmax.f32 %v2687, 0.0
        %v2704 = vmax.f32 %v2688, 0.0
        %v2705 = vmax.f32 %v2689, 0.0
        %v2706 = vmax.f32 %v2690, 0.0
        %v2707 = vmax.f32 %v2691, 0.0
        %v2708 = vmax.f32 %v2692, 0.0
        %v2709 = vld [vmem:[%s7] sm:$0x1]
        %v2711 = vlaneseq
        %v2712 = vshrl.u32 %v2711, 7
        %v2713 = vsub.s32 0, %v2712
        %v2714 = vrot.slane %v2709, %v2713
        %v2716 = vmul.f32 %v2693, %v2714
        %v2717 = vmul.f32 %v2694, %v2714
        %v2718 = vmul.f32 %v2695, %v2714
        %v2719 = vmul.f32 %v2696, %v2714
        %v2720 = vmul.f32 %v2697, %v2714
        %v2721 = vmul.f32 %v2698, %v2714
        %v2722 = vmul.f32 %v2699, %v2714
        %v2723 = vmul.f32 %v2700, %v2714
        %v2724 = vmul.f32 %v2701, %v2714
        %v2725 = vmul.f32 %v2702, %v2714
        %v2726 = vmul.f32 %v2703, %v2714
        %v2727 = vmul.f32 %v2704, %v2714
        %v2728 = vmul.f32 %v2705, %v2714
        %v2729 = vmul.f32 %v2706, %v2714
        %v2730 = vmul.f32 %v2707, %v2714
        %v2731 = vmul.f32 %v2708, %v2714
        %v2732 = vsel %vm1077, %v2716, 0.0
        %2733 = vadd.xlane.f32.xlu0 %v2732
        %v2734 = vpop.xlane.xlu0 %2733
        %v2735 = vsel %vm1077, %v2717, 0.0
        %2736 = vadd.xlane.f32.xlu0 %v2735
        %v2737 = vpop.xlane.xlu0 %2736
        %v2738 = vsel %vm1077, %v2718, 0.0
        %2739 = vadd.xlane.f32.xlu0 %v2738
        %v2740 = vpop.xlane.xlu0 %2739
        %v2741 = vsel %vm1077, %v2719, 0.0
        %2742 = vadd.xlane.f32.xlu0 %v2741
        %v2743 = vpop.xlane.xlu0 %2742
        %v2744 = vsel %vm1077, %v2720, 0.0
        %2745 = vadd.xlane.f32.xlu0 %v2744
        %v2746 = vpop.xlane.xlu0 %2745
        %v2747 = vsel %vm1077, %v2721, 0.0
        %2748 = vadd.xlane.f32.xlu0 %v2747
        %v2749 = vpop.xlane.xlu0 %2748
        %v2750 = vsel %vm1077, %v2722, 0.0
        %2751 = vadd.xlane.f32.xlu0 %v2750
        %v2752 = vpop.xlane.xlu0 %2751
        %v2753 = vsel %vm1077, %v2723, 0.0
        %2754 = vadd.xlane.f32.xlu0 %v2753
        %v2755 = vpop.xlane.xlu0 %2754
        %v2756 = vsel %vm1077, %v2724, 0.0
        %2757 = vadd.xlane.f32.xlu0 %v2756
        %v2758 = vpop.xlane.xlu0 %2757
        %v2759 = vsel %vm1077, %v2725, 0.0
        %2760 = vadd.xlane.f32.xlu0 %v2759
        %v2761 = vpop.xlane.xlu0 %2760
        %v2762 = vsel %vm1077, %v2726, 0.0
        %2763 = vadd.xlane.f32.xlu0 %v2762
        %v2764 = vpop.xlane.xlu0 %2763
        %v2765 = vsel %vm1077, %v2727, 0.0
        %2766 = vadd.xlane.f32.xlu0 %v2765
        %v2767 = vpop.xlane.xlu0 %2766
        %v2768 = vsel %vm1077, %v2728, 0.0
        %2769 = vadd.xlane.f32.xlu0 %v2768
        %v2770 = vpop.xlane.xlu0 %2769
        %v2771 = vsel %vm1077, %v2729, 0.0
        %2772 = vadd.xlane.f32.xlu0 %v2771
        %v2773 = vpop.xlane.xlu0 %2772
        %v2774 = vsel %vm1077, %v2730, 0.0
        %2775 = vadd.xlane.f32.xlu0 %v2774
        %v2776 = vpop.xlane.xlu0 %2775
        %v2777 = vsel %vm1077, %v2731, 0.0
        %2778 = vadd.xlane.f32.xlu0 %v2777
        %v2779 = vpop.xlane.xlu0 %2778
        %v2796 = vlaneseq
        %v2797 = vshrl.u32 %v2796, 7
        %v2798 = vsub.s32 %v442, %v2797
        %v2799 = vrot.slane %v2734, %v2798
        %v2800 = vadd.s32 %v442, 4294967288
        %v2801 = vlaneseq
        %v2802 = vshrl.u32 %v2801, 7
        %v2803 = vsub.s32 %v2800, %v2802
        %v2804 = vrot.slane %v2737, %v2803
        %vm2805 = vcmask 130112
        %v2806 = vsel %vm2805, %v2804, %v2799
        %v2807 = vadd.s32 %v442, 4294967280
        %v2808 = vlaneseq
        %v2809 = vshrl.u32 %v2808, 7
        %v2810 = vsub.s32 %v2807, %v2809
        %v2811 = vrot.slane %v2740, %v2810
        %vm2812 = vcmask 195712
        %v2813 = vsel %vm2812, %v2811, %v2806
        %v2814 = vadd.s32 %v442, 4294967272
        %v2815 = vlaneseq
        %v2816 = vshrl.u32 %v2815, 7
        %v2817 = vsub.s32 %v2814, %v2816
        %v2818 = vrot.slane %v2743, %v2817
        %vm2819 = vcmask 261312
        %v2820 = vsel %vm2819, %v2818, %v2813
        %v2821 = vadd.s32 %v442, 4294967264
        %v2822 = vlaneseq
        %v2823 = vshrl.u32 %v2822, 7
        %v2824 = vsub.s32 %v2821, %v2823
        %v2825 = vrot.slane %v2746, %v2824
        %vm2826 = vcmask 326912
        %v2827 = vsel %vm2826, %v2825, %v2820
        %v2828 = vadd.s32 %v442, 4294967256
        %v2829 = vlaneseq
        %v2830 = vshrl.u32 %v2829, 7
        %v2831 = vsub.s32 %v2828, %v2830
        %v2832 = vrot.slane %v2749, %v2831
        %vm2833 = vcmask 392512
        %v2834 = vsel %vm2833, %v2832, %v2827
        %v2835 = vadd.s32 %v442, 4294967248
        %v2836 = vlaneseq
        %v2837 = vshrl.u32 %v2836, 7
        %v2838 = vsub.s32 %v2835, %v2837
        %v2839 = vrot.slane %v2752, %v2838
        %vm2840 = vcmask 458112
        %v2841 = vsel %vm2840, %v2839, %v2834
        %v2842 = vadd.s32 %v442, 4294967240
        %v2843 = vlaneseq
        %v2844 = vshrl.u32 %v2843, 7
        %v2845 = vsub.s32 %v2842, %v2844
        %v2846 = vrot.slane %v2755, %v2845
        %vm2847 = vcmask 523712
        %v2848 = vsel %vm2847, %v2846, %v2841
        %v2849 = vadd.s32 %v442, 4294967232
        %v2850 = vlaneseq
        %v2851 = vshrl.u32 %v2850, 7
        %v2852 = vsub.s32 %v2849, %v2851
        %v2853 = vrot.slane %v2758, %v2852
        %vm2854 = vcmask 589312
        %v2855 = vsel %vm2854, %v2853, %v2848
        %v2856 = vadd.s32 %v442, 4294967224
        %v2857 = vlaneseq
        %v2858 = vshrl.u32 %v2857, 7
        %v2859 = vsub.s32 %v2856, %v2858
        %v2860 = vrot.slane %v2761, %v2859
        %vm2861 = vcmask 654912
        %v2862 = vsel %vm2861, %v2860, %v2855
        %v2863 = vadd.s32 %v442, 4294967216
        %v2864 = vlaneseq
        %v2865 = vshrl.u32 %v2864, 7
        %v2866 = vsub.s32 %v2863, %v2865
        %v2867 = vrot.slane %v2764, %v2866
        %vm2868 = vcmask 720512
        %v2869 = vsel %vm2868, %v2867, %v2862
        %v2870 = vadd.s32 %v442, 4294967208
        %v2871 = vlaneseq
        %v2872 = vshrl.u32 %v2871, 7
        %v2873 = vsub.s32 %v2870, %v2872
        %v2874 = vrot.slane %v2767, %v2873
        %vm2875 = vcmask 786112
        %v2876 = vsel %vm2875, %v2874, %v2869
        %v2877 = vadd.s32 %v442, 4294967200
        %v2878 = vlaneseq
        %v2879 = vshrl.u32 %v2878, 7
        %v2880 = vsub.s32 %v2877, %v2879
        %v2881 = vrot.slane %v2770, %v2880
        %vm2882 = vcmask 851712
        %v2883 = vsel %vm2882, %v2881, %v2876
        %v2884 = vadd.s32 %v442, 4294967192
        %v2885 = vlaneseq
        %v2886 = vshrl.u32 %v2885, 7
        %v2887 = vsub.s32 %v2884, %v2886
        %v2888 = vrot.slane %v2773, %v2887
        %vm2889 = vcmask 917312
        %v2890 = vsel %vm2889, %v2888, %v2883
        %v2891 = vadd.s32 %v442, 4294967184
        %v2892 = vlaneseq
        %v2893 = vshrl.u32 %v2892, 7
        %v2894 = vsub.s32 %v2891, %v2893
        %v2895 = vrot.slane %v2776, %v2894
        %vm2896 = vcmask 982912
        %v2897 = vsel %vm2896, %v2895, %v2890
        %v2898 = vadd.s32 %v442, 4294967176
        %v2899 = vlaneseq
        %v2900 = vshrl.u32 %v2899, 7
        %v2901 = vsub.s32 %v2898, %v2900
        %v2902 = vrot.slane %v2779, %v2901
        %vm2903 = vcmask 1048512
        %v2904 = vsel %vm2903, %v2902, %v2897
        %2906 = vst [vmem:[%s369] sm:$0x1] %v2904
        %s2907 = sand.u32 %s211, 1
        %s2908 = scalar_lea.sflag [#allocation3], %s2907
        %s2909 = sand.u32 %s211, 1
        %s2910 = scalar_lea.vmem [#allocation2], %s2909
        %s2911 = smul.u32 16, %s25
        %p2912 = scmp.lt.s32.totalorder %s2911, 31
        %s2913 = scalar_select %p2912, %s2911, 31
        %s2914 = smul.addr %s2913, 8
        %s2915 = scalar_lea.vmem %s9, %s2914
        %s2916 = smul.u32 16, %s25
        %p2917 = scmp.lt.s32.totalorder %s2916, 31
        %s2918 = scalar_select %p2917, %s2916, 31
        %s2919 = smul.addr %s2918, 8
        %s2920 = scalar_lea.vmem %s10, %s2919
        // Predicated region
        $region53: #{tpu_custom_call.1} parent=51 // pred_check
          %p2921 = pneg %p221
        $region54: #{tpu_custom_call.1} parent=51 // pred_check_branch
          %2923 = sbr.rel (%p2921) target = $region56
        $region55: #{tpu_custom_call.1} parent=51 // pred_region
          %s2925 = ssub.s32 16, 16
          %2926 = vsyncadd %s2908, %s2925
          %s2927 = smul.addr %s25, 16
          %s2928 = scalar_lea.hbm %s8, %s2927
          %s2930 = sshll.u32 %s2910, 4
          %s2931 = int_to_ptr.vmem [resolvable:$true] %s2930
          %2933 = dma.vmem_to_hbm [thread:$0]  %s2931, 16, %s2928, %s2908
        $region56: #{tpu_custom_call.1} parent=51 // pred_fallthru
          _
        // Predicated region
        $region57: #{tpu_custom_call.1} parent=51 // pred_check
          %p2934 = pneg %p247
        $region58: #{tpu_custom_call.1} parent=51 // pred_check_branch
          %2936 = sbr.rel (%p2934) target = $region60
        $region59: #{tpu_custom_call.1} parent=51 // pred_region
          %s2937 = smul.u32 16, %s25
        $region60: #{tpu_custom_call.1} parent=51 // pred_fallthru
          _
        // Predicated region
        $region61: #{tpu_custom_call.1} parent=51 // pred_check
          %p2938 = pneg %p273
        $region62: #{tpu_custom_call.1} parent=51 // pred_check_branch
          %2940 = sbr.rel (%p2938) target = $region64
        $region63: #{tpu_custom_call.1} parent=51 // pred_region
          %s2941 = smul.u32 16, %s25
        $region64: #{tpu_custom_call.1} parent=51 // pred_fallthru
          _
      $region52: #{tpu_custom_call.1} parent=5 // pred_fallthru
        _
      %p2942 = scmp.le.s32.totalorder 2, %s20
      // Predicated region
      $region65: #{tpu_custom_call.1} parent=5 // pred_check
        %p2943 = pneg %p2942
      $region66: #{tpu_custom_call.1} parent=5 // pred_check_branch
        %2945 = sbr.rel (%p2943) target = $region68
      $region67: #{tpu_custom_call.1} parent=5 // pred_region
        %s2946 = ssub.s32 %s20, 2
        // Predicated region
        $region69: #{tpu_custom_call.1} parent=67 // pred_check
          %p2947 = pneg %p227
        $region70: #{tpu_custom_call.1} parent=67 // pred_check_branch
          %2949 = sbr.rel (%p2947) target = $region72
        $region71: #{tpu_custom_call.1} parent=67 // pred_region
          %s2950 = sand.u32 %s212, 1
          %s2951 = scalar_lea.sflag [#allocation3], %s2950
          %s2952 = sand.u32 %s212, 1
          %s2953 = scalar_lea.vmem [#allocation2], %s2952
          %2954 = dma.done %s2951, 16
        $region72: #{tpu_custom_call.1} parent=67 // pred_fallthru
          _
        // Predicated region
        $region73: #{tpu_custom_call.1} parent=67 // pred_check
          %p2955 = pneg %p253
        $region74: #{tpu_custom_call.1} parent=67 // pred_check_branch
          %2957 = sbr.rel (%p2955) target = $region76
        $region75: #{tpu_custom_call.1} parent=67 // pred_region
          %s2958 = smul.u32 16, %s26
          %p2959 = scmp.lt.s32.totalorder %s2958, 31
          %s2960 = scalar_select %p2959, %s2958, 31
          %s2961 = smul.addr %s2960, 8
          %s2962 = scalar_lea.vmem %s9, %s2961
        $region76: #{tpu_custom_call.1} parent=67 // pred_fallthru
          _
        // Predicated region
        $region77: #{tpu_custom_call.1} parent=67 // pred_check
          %p2963 = pneg %p279
        $region78: #{tpu_custom_call.1} parent=67 // pred_check_branch
          %2965 = sbr.rel (%p2963) target = $region80
        $region79: #{tpu_custom_call.1} parent=67 // pred_region
          %s2966 = smul.u32 16, %s26
          %p2967 = scmp.lt.s32.totalorder %s2966, 31
          %s2968 = scalar_select %p2967, %s2966, 31
          %s2969 = smul.addr %s2968, 8
          %s2970 = scalar_lea.vmem %s10, %s2969
        $region80: #{tpu_custom_call.1} parent=67 // pred_fallthru
          _
      $region68: #{tpu_custom_call.1} parent=5 // pred_fallthru
        _
    $region6: #{tpu_custom_call.1} parent=1 // loop_footer
      %s24 = sadd.s32 1, %s20
    $region7: #{tpu_custom_call.1} parent=1 // loop_footer_branch
      %19 = sbr.rel target = $region3
    $region8: #{tpu_custom_call.1} parent=1 // loop_exit
      _
    %2971 = vsyncpa [#allocation3], 1
    %s2972 = scalar_lea.sflag [#allocation3], 1
    %2973 = vsyncpa %s2972, 1

</llo_original>
